<compile_context>
chip_gen: v7x
topology: tpu7x:2x2x1
jax: 0.10.0
libtpu: 0.0.40
codegen_flags: <defaults>
</compile_context>

<pallas_src>
import math

import jax
import jax.numpy as jnp
from jax.experimental import pallas as pl
from jax.experimental.pallas import tpu as pltpu

EPS = 1e-5


def _round_up(x, m):
    return (x + m - 1) // m * m


# ----------------------------- Pallas kernels ------------------------------

def _make_spatial_kernel(offs, ci_p, lw_pad):
    """Tap-loop spatial conv on one (n, d) plane.

    acc[Ci, LW] = bias + sum_t w_t[Ci, Cin] @ x_plane[Cin, off_t : off_t + LW]

    Also emits masked per-plane sum / sum-of-squares (mask excludes the
    wide-layout gap columns and lane padding) for the BatchNorm batch stats.
    """

    def kernel(x_ref, w_ref, b_ref, m_ref, y_ref, s_ref, ss_ref):
        acc = jnp.broadcast_to(b_ref[...], (ci_p, lw_pad))          # f32
        for t, off in enumerate(offs):
            xw = x_ref[:, off:off + lw_pad]                         # (Cin_p, LW)
            acc = acc + jnp.dot(w_ref[t], xw,
                                preferred_element_type=jnp.float32)
        y_ref[...] = acc.astype(y_ref.dtype)                        # bf16 store
        yv = acc * m_ref[...]                                       # mask valid cols
        s_ref[...] = jnp.sum(yv, axis=1, keepdims=True)             # (Ci_p, 1)
        ss_ref[...] = jnp.sum(yv * acc, axis=1, keepdims=True)      # (Ci_p, 1)

    return kernel


def _make_temporal_kernel(d_in_sz, d_out_sz, kt_sz, st_t, pd_t, co_p, tile_lw):
    """Fused BN-affine + ReLU + temporal conv (taps + output depth in-kernel).

    Every input depth slice is normalized exactly once; taps that fall in the
    zero-padded depth region are skipped at trace time (zero contribution,
    matching Conv3d zero padding of its input).
    """

    def kernel(y_ref, w_ref, sc_ref, sh_ref, b_ref, o_ref):
        acts = []
        for d in range(d_in_sz):
            a = y_ref[d].astype(jnp.float32) * sc_ref[...] + sh_ref[...]
            acts.append(jnp.maximum(a, 0.0).astype(jnp.bfloat16))
        bias = jnp.broadcast_to(b_ref[...], (co_p, tile_lw))        # f32
        for do in range(d_out_sz):
            acc = bias
            for kt in range(kt_sz):
                d = do * st_t - pd_t + kt
                if 0 <= d < d_in_sz:
                    acc = acc + jnp.dot(w_ref[kt], acts[d],
                                        preferred_element_type=jnp.float32)
            o_ref[do, :, :] = acc

    return kernel


# ------------------------------ parameters ---------------------------------

def make_block_params(key, in_channels, out_channels, kernel):
    kt, kh, kw = kernel
    interim = int(math.floor(kt * kh * kw * in_channels * out_channels /
                             (kh * kw * in_channels + kt * out_channels)))
    ks = jax.random.split(key, 6)
    fan_s = in_channels * kh * kw
    ws = jax.random.uniform(ks[0], (interim, in_channels, 1, kh, kw),
                            jnp.float32, -1.0, 1.0) / math.sqrt(fan_s)
    bs = jax.random.uniform(ks[1], (interim,), jnp.float32, -1.0, 1.0) / math.sqrt(fan_s)
    gamma = 1.0 + 0.1 * jax.random.normal(ks[2], (interim,), jnp.float32)
    beta = 0.1 * jax.random.normal(ks[3], (interim,), jnp.float32)
    fan_t = interim * kt
    wt = jax.random.uniform(ks[4], (out_channels, interim, kt, 1, 1),
                            jnp.float32, -1.0, 1.0) / math.sqrt(fan_t)
    bt = jax.random.uniform(ks[5], (out_channels,), jnp.float32, -1.0, 1.0) / math.sqrt(fan_t)
    return dict(ws=ws, bs=bs, gamma=gamma, beta=beta, wt=wt, bt=bt)


# ------------------------------ block wrapper ------------------------------

def block_forward(x, params, stride, padding):
    ws, bs = params["ws"], params["bs"]
    gamma, beta = params["gamma"], params["beta"]
    wt, bt = params["wt"], params["bt"]
    Ci, Cin, _, KH, KW = ws.shape
    Cout, _, KT, _, _ = wt.shape
    st_t, st_h, st_w = stride
    pd_t, pd_h, pd_w = padding
    N, C, D, H, W = x.shape
    assert C == Cin

    # channel (sublane) padding: f32 -> x8, bf16 interim -> x16, f32 out -> x8
    Cin_p = _round_up(Cin, 8)
    Ci_p = _round_up(Ci, 16)
    Co_p = _round_up(Cout, 8)

    # ---- wide-plane geometry: spatial positions on the lane axis -----------
    H_pad = H + 2 * pd_h
    W_p = W + 2 * pd_w
    Ho = (H_pad - KH) // st_h + 1
    Wo = (W_p - KW) // st_w + 1
    row_span = st_h * W_p                       # lane distance between output rows
    Lw_valid = (Ho - 1) * row_span + (Wo - 1) * st_w + 1
    if Lw_valid <= 2048:
        TILE_LW = _round_up(Lw_valid, 128)
        Lw_pad = TILE_LW
    else:
        TILE_LW = 2048
        Lw_pad = _round_up(Lw_valid, TILE_LW)
    assert Lw_pad % TILE_LW == 0
    max_off = (KH - 1) * W_p + (KW - 1)
    HWx = max(max_off + Lw_pad, H_pad * W_p)    # padded-plane lane extent
    offs = [kh * W_p + kw for kh in range(KH) for kw in range(KW)]

    # ---- spatial kernel inputs ---------------------------------------------
    xc = jnp.transpose(x, (0, 2, 1, 3, 4))                       # (N, D, Cin, H, W)
    xp = jnp.pad(xc, ((0, 0), (0, 0), (0, 0), (pd_h, pd_h), (pd_w, pd_w)))
    xf = xp.reshape(N, D, Cin, H_pad * W_p)
    xf = jnp.pad(xf, ((0, 0), (0, 0), (0, Cin_p - Cin),
                      (0, HWx - H_pad * W_p))).astype(jnp.float32)

    # weight [Ci, Cin, 1, KH, KW] -> [KH*KW, Ci_p, Cin_p] (tap-major)
    w_s = jnp.transpose(ws[:, :, 0, :, :], (2, 3, 0, 1)).reshape(KH * KW, Ci, Cin)
    w_s = jnp.pad(w_s, ((0, 0), (0, Ci_p - Ci), (0, Cin_p - Cin))).astype(jnp.float32)
    b_s = jnp.pad(bs, (0, Ci_p - Ci)).reshape(Ci_p, 1).astype(jnp.float32)

    # valid-column mask for the BN statistics (wide layout has gap columns)
    q = jnp.arange(Lw_pad)
    r = q % row_span
    mask = ((q < Lw_valid) & (r % st_w == 0) & (r // st_w < Wo) & (r < W_p))
    mask = mask.astype(jnp.float32).reshape(1, Lw_pad)

    y_wide, psum, psumsq = pl.pallas_call(
        _make_spatial_kernel(offs, Ci_p, Lw_pad),
        grid=(N, D),
        in_specs=[
            pl.BlockSpec((None, None, Cin_p, HWx), lambda n, d: (n, d, 0, 0)),
            pl.BlockSpec((KH * KW, Ci_p, Cin_p), lambda n, d: (0, 0, 0)),
            pl.BlockSpec((Ci_p, 1), lambda n, d: (0, 0)),
            pl.BlockSpec((1, Lw_pad), lambda n, d: (0, 0)),
        ],
        out_specs=(
            pl.BlockSpec((None, None, Ci_p, Lw_pad), lambda n, d: (n, d, 0, 0)),
            pl.BlockSpec((None, None, Ci_p, 1), lambda n, d: (n, d, 0, 0)),
            pl.BlockSpec((None, None, Ci_p, 1), lambda n, d: (n, d, 0, 0)),
        ),
        out_shape=(
            jax.ShapeDtypeStruct((N, D, Ci_p, Lw_pad), jnp.bfloat16),
            jax.ShapeDtypeStruct((N, D, Ci_p, 1), jnp.float32),
            jax.ShapeDtypeStruct((N, D, Ci_p, 1), jnp.float32),
        ),
        compiler_params=pltpu.CompilerParams(
            dimension_semantics=("parallel", "parallel")),
    )(xf, w_s, b_s, mask)

    # ---- finish BatchNorm batch statistics (tiny wrapper reduction) --------
    cnt = jnp.float32(N * D * Ho * Wo)
    mean = jnp.sum(psum[:, :, :, 0], axis=(0, 1)) / cnt          # (Ci_p,)
    ex2 = jnp.sum(psumsq[:, :, :, 0], axis=(0, 1)) / cnt
    var = jnp.maximum(ex2 - mean * mean, 0.0)                    # biased var
    g_p = jnp.pad(gamma, (0, Ci_p - Ci))
    be_p = jnp.pad(beta, (0, Ci_p - Ci))
    scale = g_p * jax.lax.rsqrt(var + EPS)
    shift = be_p - mean * scale
    scale2 = scale.reshape(Ci_p, 1).astype(jnp.float32)
    shift2 = shift.reshape(Ci_p, 1).astype(jnp.float32)

    # ---- temporal conv (fused BN + ReLU), resident weight, in-kernel taps --
    Do = (D + 2 * pd_t - KT) // st_t + 1
    w_t = jnp.transpose(wt[:, :, :, 0, 0], (2, 0, 1))            # (KT, Cout, Ci)
    w_t = jnp.pad(w_t, ((0, 0), (0, Co_p - Cout), (0, Ci_p - Ci))).astype(jnp.bfloat16)
    b_t = jnp.pad(bt, (0, Co_p - Cout)).reshape(Co_p, 1).astype(jnp.float32)

    HWt = Lw_pad // TILE_LW
    z = pl.pallas_call(
        _make_temporal_kernel(D, Do, KT, st_t, pd_t, Co_p, TILE_LW),
        grid=(N, HWt),
        in_specs=[
            pl.BlockSpec((None, D, Ci_p, TILE_LW), lambda n, h: (n, 0, 0, h)),
            pl.BlockSpec((KT, Co_p, Ci_p), lambda n, h: (0, 0, 0)),
            pl.BlockSpec((Ci_p, 1), lambda n, h: (0, 0)),
            pl.BlockSpec((Ci_p, 1), lambda n, h: (0, 0)),
            pl.BlockSpec((Co_p, 1), lambda n, h: (0, 0)),
        ],
        out_specs=pl.BlockSpec((None, Do, Co_p, TILE_LW), lambda n, h: (n, 0, 0, h)),
        out_shape=jax.ShapeDtypeStruct((N, Do, Co_p, Lw_pad), jnp.float32),
        compiler_params=pltpu.CompilerParams(
            dimension_semantics=("parallel", "parallel")),
    )(y_wide, w_t, scale2, shift2, b_t)

    # ---- extract valid output columns, back to NCDHW -----------------------
    z = z[:, :, :Cout, :Lw_valid]
    z = jnp.pad(z, ((0, 0), (0, 0), (0, 0), (0, Ho * row_span - Lw_valid)))
    z = z.reshape(N, Do, Cout, Ho, row_span)[:, :, :, :, 0:Wo * st_w:st_w]
    return jnp.transpose(z, (0, 2, 1, 3, 4))                     # (N, Cout, Do, Ho, Wo)


# ------------------------------ pure-JAX reference --------------------------

def block_reference(x, params, stride, padding):
    ws, bs = params["ws"], params["bs"]
    gamma, beta = params["gamma"], params["beta"]
    wt, bt = params["wt"], params["bt"]
    dn = ("NCDHW", "OIDHW", "NCDHW")
    y = jax.lax.conv_general_dilated(
        x, ws, window_strides=(1, stride[1], stride[2]),
        padding=[(0, 0), (padding[1], padding[1]), (padding[2], padding[2])],
        dimension_numbers=dn)
    y = y + bs[None, :, None, None, None]
    mean = y.mean(axis=(0, 2, 3, 4), keepdims=True)
    var = ((y - mean) ** 2).mean(axis=(0, 2, 3, 4), keepdims=True)
    y = (y - mean) * jax.lax.rsqrt(var + EPS)
    y = y * gamma[None, :, None, None, None] + beta[None, :, None, None, None]
    y = jnp.maximum(y, 0.0)
    z = jax.lax.conv_general_dilated(
        y, wt, window_strides=(stride[0], 1, 1),
        padding=[(padding[0], padding[0]), (0, 0), (0, 0)],
        dimension_numbers=dn)
    return z + bt[None, :, None, None, None]


if __name__ == "__main__":
    in_channels, out_channels = 4, 8
    kernel, stride, padding = (3, 3, 3), (1, 1, 1), (1, 1, 1)
    N, D, H, W = 2, 4, 8, 8

    key = jax.random.PRNGKey(0)
    kx, kp = jax.random.split(key)
    x = jax.random.normal(kx, (N, in_channels, D, H, W), jnp.float32)
    params = make_block_params(kp, in_channels, out_channels, kernel)

    out = jax.block_until_ready(block_forward(x, params, stride, padding))
    ref = jax.block_until_ready(block_reference(x, params, stride, padding))
    assert out.shape == ref.shape, (out.shape, ref.shape)
    if not bool(jnp.allclose(out, ref, rtol=2e-2, atol=2e-2)):
        err = float(jnp.max(jnp.abs(out - ref)))
        raise AssertionError(f"Pallas block output mismatch vs reference (max abs err {err})")

    print("KERNEL_OK")
</pallas_src>

<mosaic_0001>
module attributes {stable_mosaic.version = 11 : i64} {
  func.func @kernel(%arg0: i32, %arg1: i32, %arg2: memref<1x1x8x150xf32, #tpu.memory_space<vmem>>, %arg3: memref<9x16x8xf32, #tpu.memory_space<vmem>>, %arg4: memref<16x1xf32, #tpu.memory_space<vmem>>, %arg5: memref<1x128xf32, #tpu.memory_space<vmem>>, %arg6: memref<1x1x16x128xbf16, #tpu.memory_space<vmem>>, %arg7: memref<1x1x16x1xf32, #tpu.memory_space<vmem>>, %arg8: memref<1x1x16x1xf32, #tpu.memory_space<vmem>>) attributes {dimension_semantics = [#tpu.dimension_semantics<parallel>, #tpu.dimension_semantics<parallel>], iteration_bounds = array<i64: 2, 4>, scalar_prefetch = 0 : i64, scratch_operands = 0 : i64, tpu.core_type = #tpu.core_type<tc>, window_params = [{transform_indices = @transform_0, window_bounds = array<i64: 1, 1, 8, 150>}, {pipeline_mode = #tpu.pipeline_mode<synchronous>, transform_indices = @transform_1, window_bounds = array<i64: 9, 16, 8>}, {pipeline_mode = #tpu.pipeline_mode<synchronous>, transform_indices = @transform_2, window_bounds = array<i64: 16, 1>}, {pipeline_mode = #tpu.pipeline_mode<synchronous>, transform_indices = @transform_3, window_bounds = array<i64: 1, 128>}, {transform_indices = @transform_4, window_bounds = array<i64: 1, 1, 16, 128>}, {transform_indices = @transform_5, window_bounds = array<i64: 1, 1, 16, 1>}, {transform_indices = @transform_6, window_bounds = array<i64: 1, 1, 16, 1>}]} {
    %c0 = arith.constant 0 : index
    %c0_0 = arith.constant 0 : index
    %0 = vector.load %arg4[%c0, %c0_0] : memref<16x1xf32, #tpu.memory_space<vmem>>, vector<16x1xf32>
    %1 = vector.shape_cast %0 : vector<16x1xf32> to vector<16x1xf32>
    %2 = vector.broadcast %1 : vector<16x1xf32> to vector<16x128xf32>
    %c0_1 = arith.constant 0 : index
    %c0_2 = arith.constant 0 : index
    %c0_3 = arith.constant 0 : index
    %c0_4 = arith.constant 0 : index
    %3 = vector.load %arg2[%c0_1, %c0_2, %c0_3, %c0_4] : memref<1x1x8x150xf32, #tpu.memory_space<vmem>>, vector<1x1x8x128xf32>
    %4 = vector.shape_cast %3 : vector<1x1x8x128xf32> to vector<8x128xf32>
    %c0_5 = arith.constant 0 : index
    %c0_6 = arith.constant 0 : index
    %c0_7 = arith.constant 0 : index
    %5 = vector.load %arg3[%c0_5, %c0_6, %c0_7] : memref<9x16x8xf32, #tpu.memory_space<vmem>>, vector<1x16x8xf32>
    %6 = vector.shape_cast %5 : vector<1x16x8xf32> to vector<16x8xf32>
    %cst = arith.constant dense<0.000000e+00> : vector<16x128xf32>
    %7 = tpu.matmul %6, %4, %cst {dimension_numbers = #tpu.dot_dimension_numbers<[1], [0], [0], [1], [0, 0, 1, 1], [], []>} : vector<16x8xf32>, vector<8x128xf32>, vector<16x128xf32> -> vector<16x128xf32>
    %8 = arith.addf %2, %7 : vector<16x128xf32>
    %c0_8 = arith.constant 0 : index
    %c0_9 = arith.constant 0 : index
    %c0_10 = arith.constant 0 : index
    %c1 = arith.constant 1 : index
    %9 = vector.load %arg2[%c0_8, %c0_9, %c0_10, %c1] : memref<1x1x8x150xf32, #tpu.memory_space<vmem>>, vector<1x1x8x128xf32>
    %10 = vector.shape_cast %9 : vector<1x1x8x128xf32> to vector<8x128xf32>
    %c1_11 = arith.constant 1 : index
    %c0_12 = arith.constant 0 : index
    %c0_13 = arith.constant 0 : index
    %11 = vector.load %arg3[%c1_11, %c0_12, %c0_13] : memref<9x16x8xf32, #tpu.memory_space<vmem>>, vector<1x16x8xf32>
    %12 = vector.shape_cast %11 : vector<1x16x8xf32> to vector<16x8xf32>
    %cst_14 = arith.constant dense<0.000000e+00> : vector<16x128xf32>
    %13 = tpu.matmul %12, %10, %cst_14 {dimension_numbers = #tpu.dot_dimension_numbers<[1], [0], [0], [1], [0, 0, 1, 1], [], []>} : vector<16x8xf32>, vector<8x128xf32>, vector<16x128xf32> -> vector<16x128xf32>
    %14 = arith.addf %8, %13 : vector<16x128xf32>
    %c0_15 = arith.constant 0 : index
    %c0_16 = arith.constant 0 : index
    %c0_17 = arith.constant 0 : index
    %c2 = arith.constant 2 : index
    %15 = vector.load %arg2[%c0_15, %c0_16, %c0_17, %c2] : memref<1x1x8x150xf32, #tpu.memory_space<vmem>>, vector<1x1x8x128xf32>
    %16 = vector.shape_cast %15 : vector<1x1x8x128xf32> to vector<8x128xf32>
    %c2_18 = arith.constant 2 : index
    %c0_19 = arith.constant 0 : index
    %c0_20 = arith.constant 0 : index
    %17 = vector.load %arg3[%c2_18, %c0_19, %c0_20] : memref<9x16x8xf32, #tpu.memory_space<vmem>>, vector<1x16x8xf32>
    %18 = vector.shape_cast %17 : vector<1x16x8xf32> to vector<16x8xf32>
    %cst_21 = arith.constant dense<0.000000e+00> : vector<16x128xf32>
    %19 = tpu.matmul %18, %16, %cst_21 {dimension_numbers = #tpu.dot_dimension_numbers<[1], [0], [0], [1], [0, 0, 1, 1], [], []>} : vector<16x8xf32>, vector<8x128xf32>, vector<16x128xf32> -> vector<16x128xf32>
    %20 = arith.addf %14, %19 : vector<16x128xf32>
    %c0_22 = arith.constant 0 : index
    %c0_23 = arith.constant 0 : index
    %c0_24 = arith.constant 0 : index
    %c10 = arith.constant 10 : index
    %21 = vector.load %arg2[%c0_22, %c0_23, %c0_24, %c10] : memref<1x1x8x150xf32, #tpu.memory_space<vmem>>, vector<1x1x8x128xf32>
    %22 = vector.shape_cast %21 : vector<1x1x8x128xf32> to vector<8x128xf32>
    %c3 = arith.constant 3 : index
    %c0_25 = arith.constant 0 : index
    %c0_26 = arith.constant 0 : index
    %23 = vector.load %arg3[%c3, %c0_25, %c0_26] : memref<9x16x8xf32, #tpu.memory_space<vmem>>, vector<1x16x8xf32>
    %24 = vector.shape_cast %23 : vector<1x16x8xf32> to vector<16x8xf32>
    %cst_27 = arith.constant dense<0.000000e+00> : vector<16x128xf32>
    %25 = tpu.matmul %24, %22, %cst_27 {dimension_numbers = #tpu.dot_dimension_numbers<[1], [0], [0], [1], [0, 0, 1, 1], [], []>} : vector<16x8xf32>, vector<8x128xf32>, vector<16x128xf32> -> vector<16x128xf32>
    %26 = arith.addf %20, %25 : vector<16x128xf32>
    %c0_28 = arith.constant 0 : index
    %c0_29 = arith.constant 0 : index
    %c0_30 = arith.constant 0 : index
    %c11 = arith.constant 11 : index
    %27 = vector.load %arg2[%c0_28, %c0_29, %c0_30, %c11] : memref<1x1x8x150xf32, #tpu.memory_space<vmem>>, vector<1x1x8x128xf32>
    %28 = vector.shape_cast %27 : vector<1x1x8x128xf32> to vector<8x128xf32>
    %c4 = arith.constant 4 : index
    %c0_31 = arith.constant 0 : index
    %c0_32 = arith.constant 0 : index
    %29 = vector.load %arg3[%c4, %c0_31, %c0_32] : memref<9x16x8xf32, #tpu.memory_space<vmem>>, vector<1x16x8xf32>
    %30 = vector.shape_cast %29 : vector<1x16x8xf32> to vector<16x8xf32>
    %cst_33 = arith.constant dense<0.000000e+00> : vector<16x128xf32>
    %31 = tpu.matmul %30, %28, %cst_33 {dimension_numbers = #tpu.dot_dimension_numbers<[1], [0], [0], [1], [0, 0, 1, 1], [], []>} : vector<16x8xf32>, vector<8x128xf32>, vector<16x128xf32> -> vector<16x128xf32>
    %32 = arith.addf %26, %31 : vector<16x128xf32>
    %c0_34 = arith.constant 0 : index
    %c0_35 = arith.constant 0 : index
    %c0_36 = arith.constant 0 : index
    %c12 = arith.constant 12 : index
    %33 = vector.load %arg2[%c0_34, %c0_35, %c0_36, %c12] : memref<1x1x8x150xf32, #tpu.memory_space<vmem>>, vector<1x1x8x128xf32>
    %34 = vector.shape_cast %33 : vector<1x1x8x128xf32> to vector<8x128xf32>
    %c5 = arith.constant 5 : index
    %c0_37 = arith.constant 0 : index
    %c0_38 = arith.constant 0 : index
    %35 = vector.load %arg3[%c5, %c0_37, %c0_38] : memref<9x16x8xf32, #tpu.memory_space<vmem>>, vector<1x16x8xf32>
    %36 = vector.shape_cast %35 : vector<1x16x8xf32> to vector<16x8xf32>
    %cst_39 = arith.constant dense<0.000000e+00> : vector<16x128xf32>
    %37 = tpu.matmul %36, %34, %cst_39 {dimension_numbers = #tpu.dot_dimension_numbers<[1], [0], [0], [1], [0, 0, 1, 1], [], []>} : vector<16x8xf32>, vector<8x128xf32>, vector<16x128xf32> -> vector<16x128xf32>
    %38 = arith.addf %32, %37 : vector<16x128xf32>
    %c0_40 = arith.constant 0 : index
    %c0_41 = arith.constant 0 : index
    %c0_42 = arith.constant 0 : index
    %c20 = arith.constant 20 : index
    %39 = vector.load %arg2[%c0_40, %c0_41, %c0_42, %c20] : memref<1x1x8x150xf32, #tpu.memory_space<vmem>>, vector<1x1x8x128xf32>
    %40 = vector.shape_cast %39 : vector<1x1x8x128xf32> to vector<8x128xf32>
    %c6 = arith.constant 6 : index
    %c0_43 = arith.constant 0 : index
    %c0_44 = arith.constant 0 : index
    %41 = vector.load %arg3[%c6, %c0_43, %c0_44] : memref<9x16x8xf32, #tpu.memory_space<vmem>>, vector<1x16x8xf32>
    %42 = vector.shape_cast %41 : vector<1x16x8xf32> to vector<16x8xf32>
    %cst_45 = arith.constant dense<0.000000e+00> : vector<16x128xf32>
    %43 = tpu.matmul %42, %40, %cst_45 {dimension_numbers = #tpu.dot_dimension_numbers<[1], [0], [0], [1], [0, 0, 1, 1], [], []>} : vector<16x8xf32>, vector<8x128xf32>, vector<16x128xf32> -> vector<16x128xf32>
    %44 = arith.addf %38, %43 : vector<16x128xf32>
    %c0_46 = arith.constant 0 : index
    %c0_47 = arith.constant 0 : index
    %c0_48 = arith.constant 0 : index
    %c21 = arith.constant 21 : index
    %45 = vector.load %arg2[%c0_46, %c0_47, %c0_48, %c21] : memref<1x1x8x150xf32, #tpu.memory_space<vmem>>, vector<1x1x8x128xf32>
    %46 = vector.shape_cast %45 : vector<1x1x8x128xf32> to vector<8x128xf32>
    %c7 = arith.constant 7 : index
    %c0_49 = arith.constant 0 : index
    %c0_50 = arith.constant 0 : index
    %47 = vector.load %arg3[%c7, %c0_49, %c0_50] : memref<9x16x8xf32, #tpu.memory_space<vmem>>, vector<1x16x8xf32>
    %48 = vector.shape_cast %47 : vector<1x16x8xf32> to vector<16x8xf32>
    %cst_51 = arith.constant dense<0.000000e+00> : vector<16x128xf32>
    %49 = tpu.matmul %48, %46, %cst_51 {dimension_numbers = #tpu.dot_dimension_numbers<[1], [0], [0], [1], [0, 0, 1, 1], [], []>} : vector<16x8xf32>, vector<8x128xf32>, vector<16x128xf32> -> vector<16x128xf32>
    %50 = arith.addf %44, %49 : vector<16x128xf32>
    %c0_52 = arith.constant 0 : index
    %c0_53 = arith.constant 0 : index
    %c0_54 = arith.constant 0 : index
    %c22 = arith.constant 22 : index
    %51 = vector.load %arg2[%c0_52, %c0_53, %c0_54, %c22] : memref<1x1x8x150xf32, #tpu.memory_space<vmem>>, vector<1x1x8x128xf32>
    %52 = vector.shape_cast %51 : vector<1x1x8x128xf32> to vector<8x128xf32>
    %c8 = arith.constant 8 : index
    %c0_55 = arith.constant 0 : index
    %c0_56 = arith.constant 0 : index
    %53 = vector.load %arg3[%c8, %c0_55, %c0_56] : memref<9x16x8xf32, #tpu.memory_space<vmem>>, vector<1x16x8xf32>
    %54 = vector.shape_cast %53 : vector<1x16x8xf32> to vector<16x8xf32>
    %cst_57 = arith.constant dense<0.000000e+00> : vector<16x128xf32>
    %55 = tpu.matmul %54, %52, %cst_57 {dimension_numbers = #tpu.dot_dimension_numbers<[1], [0], [0], [1], [0, 0, 1, 1], [], []>} : vector<16x8xf32>, vector<8x128xf32>, vector<16x128xf32> -> vector<16x128xf32>
    %56 = arith.addf %50, %55 : vector<16x128xf32>
    %57 = arith.truncf %56 : vector<16x128xf32> to vector<16x128xbf16>
    %c0_58 = arith.constant 0 : index
    %c0_59 = arith.constant 0 : index
    %c0_60 = arith.constant 0 : index
    %c0_61 = arith.constant 0 : index
    %58 = vector.load %arg6[%c0_58, %c0_59, %c0_60, %c0_61] : memref<1x1x16x128xbf16, #tpu.memory_space<vmem>>, vector<1x1x16x128xbf16>
    %59 = vector.shape_cast %58 : vector<1x1x16x128xbf16> to vector<16x128xbf16>
    %60 = vector.shape_cast %57 : vector<16x128xbf16> to vector<1x1x16x128xbf16>
    tpu.vector_store %arg6[%c0_58, %c0_59, %c0_60, %c0_61], %60 {strides = array<i32>} : memref<1x1x16x128xbf16, #tpu.memory_space<vmem>>, vector<1x1x16x128xbf16>,
    %c0_62 = arith.constant 0 : index
    %c0_63 = arith.constant 0 : index
    %61 = vector.load %arg5[%c0_62, %c0_63] : memref<1x128xf32, #tpu.memory_space<vmem>>, vector<1x128xf32>
    %62 = vector.broadcast %61 : vector<1x128xf32> to vector<16x128xf32>
    %63 = arith.mulf %56, %62 : vector<16x128xf32>
    %cst_64 = arith.constant dense<0.000000e+00> : vector<16xf32>
    %64 = vector.multi_reduction <add>, %63, %cst_64 [1] : vector<16x128xf32> to vector<16xf32>
    %65 = vector.shape_cast %64 : vector<16xf32> to vector<16x1xf32>
    %c0_65 = arith.constant 0 : index
    %c0_66 = arith.constant 0 : index
    %c0_67 = arith.constant 0 : index
    %c0_68 = arith.constant 0 : index
    %66 = vector.load %arg7[%c0_65, %c0_66, %c0_67, %c0_68] : memref<1x1x16x1xf32, #tpu.memory_space<vmem>>, vector<1x1x16x1xf32>
    %67 = vector.shape_cast %66 : vector<1x1x16x1xf32> to vector<16x1xf32>
    %68 = vector.shape_cast %65 : vector<16x1xf32> to vector<1x1x16x1xf32>
    tpu.vector_store %arg7[%c0_65, %c0_66, %c0_67, %c0_68], %68 {strides = array<i32>} : memref<1x1x16x1xf32, #tpu.memory_space<vmem>>, vector<1x1x16x1xf32>,
    %69 = arith.mulf %63, %56 : vector<16x128xf32>
    %cst_69 = arith.constant dense<0.000000e+00> : vector<16xf32>
    %70 = vector.multi_reduction <add>, %69, %cst_69 [1] : vector<16x128xf32> to vector<16xf32>
    %71 = vector.shape_cast %70 : vector<16xf32> to vector<16x1xf32>
    %c0_70 = arith.constant 0 : index
    %c0_71 = arith.constant 0 : index
    %c0_72 = arith.constant 0 : index
    %c0_73 = arith.constant 0 : index
    %72 = vector.load %arg8[%c0_70, %c0_71, %c0_72, %c0_73] : memref<1x1x16x1xf32, #tpu.memory_space<vmem>>, vector<1x1x16x1xf32>
    %73 = vector.shape_cast %72 : vector<1x1x16x1xf32> to vector<16x1xf32>
    %74 = vector.shape_cast %71 : vector<16x1xf32> to vector<1x1x16x1xf32>
    tpu.vector_store %arg8[%c0_70, %c0_71, %c0_72, %c0_73], %74 {strides = array<i32>} : memref<1x1x16x1xf32, #tpu.memory_space<vmem>>, vector<1x1x16x1xf32>,
    return
  }
  func.func @transform_0(%arg0: i32, %arg1: i32) -> (i32, i32, i32, i32) {
    %c0_i32 = arith.constant 0 : i32
    %c0_i32_0 = arith.constant 0 : i32
    %c0_i32_1 = arith.constant 0 : i32
    return %arg0, %arg1, %c0_i32, %c0_i32_0 : i32, i32, i32, i32
  }
  func.func @transform_1(%arg0: i32, %arg1: i32) -> (i32, i32, i32) {
    %c0_i32 = arith.constant 0 : i32
    %c0_i32_0 = arith.constant 0 : i32
    %c0_i32_1 = arith.constant 0 : i32
    %c0_i32_2 = arith.constant 0 : i32
    return %c0_i32, %c0_i32_0, %c0_i32_1 : i32, i32, i32
  }
  func.func @transform_2(%arg0: i32, %arg1: i32) -> (i32, i32) {
    %c0_i32 = arith.constant 0 : i32
    %c0_i32_0 = arith.constant 0 : i32
    %c0_i32_1 = arith.constant 0 : i32
    return %c0_i32, %c0_i32_0 : i32, i32
  }
  func.func @transform_3(%arg0: i32, %arg1: i32) -> (i32, i32) {
    %c0_i32 = arith.constant 0 : i32
    %c0_i32_0 = arith.constant 0 : i32
    %c0_i32_1 = arith.constant 0 : i32
    return %c0_i32, %c0_i32_0 : i32, i32
  }
  func.func @transform_4(%arg0: i32, %arg1: i32) -> (i32, i32, i32, i32) {
    %c0_i32 = arith.constant 0 : i32
    %c0_i32_0 = arith.constant 0 : i32
    %c0_i32_1 = arith.constant 0 : i32
    return %arg0, %arg1, %c0_i32, %c0_i32_0 : i32, i32, i32, i32
  }
  func.func @transform_5(%arg0: i32, %arg1: i32) -> (i32, i32, i32, i32) {
    %c0_i32 = arith.constant 0 : i32
    %c0_i32_0 = arith.constant 0 : i32
    %c0_i32_1 = arith.constant 0 : i32
    return %arg0, %arg1, %c0_i32, %c0_i32_0 : i32, i32, i32, i32
  }
  func.func @transform_6(%arg0: i32, %arg1: i32) -> (i32, i32, i32, i32) {
    %c0_i32 = arith.constant 0 : i32
    %c0_i32_0 = arith.constant 0 : i32
    %c0_i32_1 = arith.constant 0 : i32
    return %arg0, %arg1, %c0_i32, %c0_i32_0 : i32, i32, i32, i32
  }
}

</mosaic_0001>

<llo_original>
// kernel: tpu_custom_call.1
$region0: #{tpu_custom_call.1}
  #allocation0 [shape = 'u32[]', space=smem, size = 0x4, offset = 0x4, fixed_abs, tag = 'smem constant byte address 0x4 - core index']
  #allocation1 [shape = 'u32[144,128]{1,0:T(1,128)}', space=vmem, size = 0x12000, scoped, tag = 'internal scratch']
  %s0 = inlined_call_operand.vmem [shape: f32[2,4,8,150], index: 0, kind: input, shape index: {}]
  %s1 = inlined_call_operand.vmem [shape: f32[9,16,8], index: 1, kind: input, shape index: {}]
  %s2 = inlined_call_operand.vmem [shape: f32[16,1], index: 2, kind: input, shape index: {}]
  %s3 = inlined_call_operand.vmem [shape: f32[1,128], index: 3, kind: input, shape index: {}]
  %s4 = inlined_call_operand.hbm [shape: bf16[2,4,16,128], index: 4, kind: output, shape index: {0}]
  %s5 = inlined_call_operand.vmem [shape: f32[2,4,16,1], index: 5, kind: output, shape index: {1}]
  %s6 = inlined_call_operand.vmem [shape: f32[2,4,16,1], index: 6, kind: output, shape index: {2}]
  %7 = xla_tuple %s4, %s5, %s6
  %s8 = sld [smem:[#allocation0]]
  $region65: #{tpu_custom_call.1} parent=0
    _
  %s10 = ssub.s32 1, %s8
  %s11 = scalar_select 0, %s10, %s8
  $region1: #{tpu_custom_call.1} parent=0
    #allocation2 [shape = 'u8[8192]{0}', space=vmem, size = 0x2000, scoped, tag = 'output window, operand 0']
    #allocation3 [shape = 's32[2]{0}', space=sflag, size = 0x8, scoped, tag = 'scoped memory for tpu_custom_call.1']
    %12 = vsyncpa [#allocation3], 0
    %s13 = scalar_lea.sflag [#allocation3], 1
    %14 = vsyncpa %s13, 0
    loop: start=0, step=1, limit=10
    $region2: #{tpu_custom_call.1} parent=1 // loop_pre_header
      _
    $region3: #{tpu_custom_call.1} parent=1 // loop_header
      %s16 = sphi 0, %s20
      %p17 = scmp.ge.s32.totalorder %s16, 10
      %s23 = sphi 0, %s35
      %s24 = sphi 0, %s31
      %s25 = sphi 0, %s23
      %s26 = sphi 0, %s24
      %s27 = sphi 0, %s25
      %s28 = sphi 0, %s26
      %s40 = sphi 0, %s42
      %s43 = sphi 0, %s40
      %s44 = sphi 0, %s43
      %s60 = sphi 0, %s44
      %s64 = sphi 0, %s64
      %s66 = sphi 0, %s64
      %s67 = sphi 0, %s66
      %s81 = sphi 0, %s67
      %s85 = sphi 0, %s85
      %s87 = sphi 0, %s85
      %s88 = sphi 0, %s87
      %s102 = sphi 0, %s88
      %s106 = sphi 0, %s106
      %s108 = sphi 0, %s106
      %s109 = sphi 0, %s108
      %s123 = sphi 0, %s109
      %s131 = sphi 0, %s133
      %s134 = sphi 0, %s131
      %s135 = sphi 0, %s134
      %s151 = sphi 0, %s135
      %s159 = sphi 0, %s161
      %s162 = sphi 0, %s159
      %s163 = sphi 0, %s162
      %s179 = sphi 0, %s163
      %s187 = sphi 0, %s189
      %s190 = sphi 0, %s187
      %s191 = sphi 0, %s190
      %s207 = sphi 0, %s191
    $region4: #{tpu_custom_call.1} parent=1 // loop_header_branch
      %19 = sbr.rel (%p17) target = $region8
    $region5: #{tpu_custom_call.1} parent=1 // loop_body
      %s21 = ssub.s32 %s16, 1
      %s22 = ssub.s32 %s16, 2
      %s29 = sadd.s32 1, %s24
      %p30 = scmp.ge.s32.totalorder %s29, 4
      %s31 = scalar_select %p30, 0, %s29
      %s32 = sadd.s32 1, %s23
      %s33 = scalar_select %p30, %s32, %s23
      %p34 = scmp.ge.s32.totalorder %s33, 2
      %s35 = scalar_select %p34, 0, %s33
      %s36 = ssub.s32 %s23, %s35
      %s37 = ssub.s32 %s24, %s31
      %s38 = sor.u32 %s36, %s37
      %p39 = scmp.eq.s32.totalorder %s38, 0
      %s41 = sadd.s32 %s40, 1
      %s42 = scalar_select %p39, %s40, %s41
      %p45 = pneg %p39
      %p46 = scmp.eq.s32.totalorder %s16, 7
      %p47 = por %p45, %p46
      %p48 = scmp.ne.s32.totalorder %s40, %s43
      %p49 = scmp.eq.s32.totalorder %s16, 0
      %p50 = por %p48, %p49
      %p51 = scmp.ne.s32.totalorder %s40, %s43
      %p52 = scmp.eq.s32.totalorder %s21, 7
      %p53 = por %p51, %p52
      %p54 = scmp.ne.s32.totalorder %s43, %s44
      %p55 = scmp.eq.s32.totalorder %s21, 0
      %p56 = por %p54, %p55
      %p57 = scmp.ne.s32.totalorder %s43, %s44
      %p58 = scmp.eq.s32.totalorder %s22, 7
      %p59 = por %p57, %p58
      %p61 = scmp.ne.s32.totalorder %s44, %s60
      %p62 = scmp.eq.s32.totalorder %s22, 0
      %p63 = por %p61, %p62
      %s65 = sadd.s32 %s64, 1
      %p68 = scmp.eq.s32.totalorder %s16, 7
      %p69 = scmp.ne.s32.totalorder %s64, %s66
      %p70 = scmp.eq.s32.totalorder %s16, 0
      %p71 = por %p69, %p70
      %p72 = scmp.ne.s32.totalorder %s64, %s66
      %p73 = scmp.eq.s32.totalorder %s21, 7
      %p74 = por %p72, %p73
      %p75 = scmp.ne.s32.totalorder %s66, %s67
      %p76 = scmp.eq.s32.totalorder %s21, 0
      %p77 = por %p75, %p76
      %p78 = scmp.ne.s32.totalorder %s66, %s67
      %p79 = scmp.eq.s32.totalorder %s22, 7
      %p80 = por %p78, %p79
      %p82 = scmp.ne.s32.totalorder %s67, %s81
      %p83 = scmp.eq.s32.totalorder %s22, 0
      %p84 = por %p82, %p83
      %s86 = sadd.s32 %s85, 1
      %p89 = scmp.eq.s32.totalorder %s16, 7
      %p90 = scmp.ne.s32.totalorder %s85, %s87
      %p91 = scmp.eq.s32.totalorder %s16, 0
      %p92 = por %p90, %p91
      %p93 = scmp.ne.s32.totalorder %s85, %s87
      %p94 = scmp.eq.s32.totalorder %s21, 7
      %p95 = por %p93, %p94
      %p96 = scmp.ne.s32.totalorder %s87, %s88
      %p97 = scmp.eq.s32.totalorder %s21, 0
      %p98 = por %p96, %p97
      %p99 = scmp.ne.s32.totalorder %s87, %s88
      %p100 = scmp.eq.s32.totalorder %s22, 7
      %p101 = por %p99, %p100
      %p103 = scmp.ne.s32.totalorder %s88, %s102
      %p104 = scmp.eq.s32.totalorder %s22, 0
      %p105 = por %p103, %p104
      %s107 = sadd.s32 %s106, 1
      %p110 = scmp.eq.s32.totalorder %s16, 7
      %p111 = scmp.ne.s32.totalorder %s106, %s108
      %p112 = scmp.eq.s32.totalorder %s16, 0
      %p113 = por %p111, %p112
      %p114 = scmp.ne.s32.totalorder %s106, %s108
      %p115 = scmp.eq.s32.totalorder %s21, 7
      %p116 = por %p114, %p115
      %p117 = scmp.ne.s32.totalorder %s108, %s109
      %p118 = scmp.eq.s32.totalorder %s21, 0
      %p119 = por %p117, %p118
      %p120 = scmp.ne.s32.totalorder %s108, %s109
      %p121 = scmp.eq.s32.totalorder %s22, 7
      %p122 = por %p120, %p121
      %p124 = scmp.ne.s32.totalorder %s109, %s123
      %p125 = scmp.eq.s32.totalorder %s22, 0
      %p126 = por %p124, %p125
      %s127 = ssub.s32 %s23, %s35
      %s128 = ssub.s32 %s24, %s31
      %s129 = sor.u32 %s127, %s128
      %p130 = scmp.eq.s32.totalorder %s129, 0
      %s132 = sadd.s32 %s131, 1
      %s133 = scalar_select %p130, %s131, %s132
      %p136 = pneg %p130
      %p137 = scmp.eq.s32.totalorder %s16, 7
      %p138 = por %p136, %p137
      %p139 = scmp.ne.s32.totalorder %s131, %s134
      %p140 = scmp.eq.s32.totalorder %s16, 0
      %p141 = por %p139, %p140
      %p142 = scmp.ne.s32.totalorder %s131, %s134
      %p143 = scmp.eq.s32.totalorder %s21, 7
      %p144 = por %p142, %p143
      %p145 = scmp.ne.s32.totalorder %s134, %s135
      %p146 = scmp.eq.s32.totalorder %s21, 0
      %p147 = por %p145, %p146
      %p148 = scmp.ne.s32.totalorder %s134, %s135
      %p149 = scmp.eq.s32.totalorder %s22, 7
      %p150 = por %p148, %p149
      %p152 = scmp.ne.s32.totalorder %s135, %s151
      %p153 = scmp.eq.s32.totalorder %s22, 0
      %p154 = por %p152, %p153
      %s155 = ssub.s32 %s23, %s35
      %s156 = ssub.s32 %s24, %s31
      %s157 = sor.u32 %s155, %s156
      %p158 = scmp.eq.s32.totalorder %s157, 0
      %s160 = sadd.s32 %s159, 1
      %s161 = scalar_select %p158, %s159, %s160
      %p164 = pneg %p158
      %p165 = scmp.eq.s32.totalorder %s16, 7
      %p166 = por %p164, %p165
      %p167 = scmp.ne.s32.totalorder %s159, %s162
      %p168 = scmp.eq.s32.totalorder %s16, 0
      %p169 = por %p167, %p168
      %p170 = scmp.ne.s32.totalorder %s159, %s162
      %p171 = scmp.eq.s32.totalorder %s21, 7
      %p172 = por %p170, %p171
      %p173 = scmp.ne.s32.totalorder %s162, %s163
      %p174 = scmp.eq.s32.totalorder %s21, 0
      %p175 = por %p173, %p174
      %p176 = scmp.ne.s32.totalorder %s162, %s163
      %p177 = scmp.eq.s32.totalorder %s22, 7
      %p178 = por %p176, %p177
      %p180 = scmp.ne.s32.totalorder %s163, %s179
      %p181 = scmp.eq.s32.totalorder %s22, 0
      %p182 = por %p180, %p181
      %s183 = ssub.s32 %s23, %s35
      %s184 = ssub.s32 %s24, %s31
      %s185 = sor.u32 %s183, %s184
      %p186 = scmp.eq.s32.totalorder %s185, 0
      %s188 = sadd.s32 %s187, 1
      %s189 = scalar_select %p186, %s187, %s188
      %p192 = pneg %p186
      %p193 = scmp.eq.s32.totalorder %s16, 7
      %p194 = por %p192, %p193
      %p195 = scmp.ne.s32.totalorder %s187, %s190
      %p196 = scmp.eq.s32.totalorder %s16, 0
      %p197 = por %p195, %p196
      %p198 = scmp.ne.s32.totalorder %s187, %s190
      %p199 = scmp.eq.s32.totalorder %s21, 7
      %p200 = por %p198, %p199
      %p201 = scmp.ne.s32.totalorder %s190, %s191
      %p202 = scmp.eq.s32.totalorder %s21, 0
      %p203 = por %p201, %p202
      %p204 = scmp.ne.s32.totalorder %s190, %s191
      %p205 = scmp.eq.s32.totalorder %s22, 7
      %p206 = por %p204, %p205
      %p208 = scmp.ne.s32.totalorder %s191, %s207
      %p209 = scmp.eq.s32.totalorder %s22, 0
      %p210 = por %p208, %p209
      %p211 = scmp.le.s32.totalorder 1, %s16
      %p212 = scmp.lt.s32.totalorder %s16, 9
      %p213 = pnand %p211, %p212
      %p214 = pneg %p213
      // Predicated region
      $region9: #{tpu_custom_call.1} parent=5 // pred_check
        _
      $region10: #{tpu_custom_call.1} parent=5 // pred_check_branch
        %216 = sbr.rel (%p213) target = $region12
      $region11: #{tpu_custom_call.1} parent=5 // pred_region
        %s217 = ssub.s32 %s16, 1
        // Predicated region
        $region13: #{tpu_custom_call.1} parent=11 // pred_check
          %p218 = pneg %p77
        $region14: #{tpu_custom_call.1} parent=11 // pred_check_branch
          %220 = sbr.rel (%p218) target = $region16
        $region15: #{tpu_custom_call.1} parent=11 // pred_region
          _
        $region16: #{tpu_custom_call.1} parent=11 // pred_fallthru
          _
        // Predicated region
        $region17: #{tpu_custom_call.1} parent=11 // pred_check
          %p221 = pneg %p98
        $region18: #{tpu_custom_call.1} parent=11 // pred_check_branch
          %223 = sbr.rel (%p221) target = $region20
        $region19: #{tpu_custom_call.1} parent=11 // pred_region
          _
        $region20: #{tpu_custom_call.1} parent=11 // pred_fallthru
          _
        // Predicated region
        $region21: #{tpu_custom_call.1} parent=11 // pred_check
          %p224 = pneg %p119
        $region22: #{tpu_custom_call.1} parent=11 // pred_check_branch
          %226 = sbr.rel (%p224) target = $region24
        $region23: #{tpu_custom_call.1} parent=11 // pred_region
          _
        $region24: #{tpu_custom_call.1} parent=11 // pred_fallthru
          _
      $region12: #{tpu_custom_call.1} parent=5 // pred_fallthru
        _
      %p227 = scmp.lt.s32.totalorder %s16, 8
      // Predicated region
      $region25: #{tpu_custom_call.1} parent=5 // pred_check
        %p228 = pneg %p227
      $region26: #{tpu_custom_call.1} parent=5 // pred_check_branch
        %230 = sbr.rel (%p228) target = $region28
      $region27: #{tpu_custom_call.1} parent=5 // pred_region
        // Predicated region
        $region29: #{tpu_custom_call.1} parent=27 // pred_check
          %p231 = pneg %p50
        $region30: #{tpu_custom_call.1} parent=27 // pred_check_branch
          %233 = sbr.rel (%p231) target = $region32
        $region31: #{tpu_custom_call.1} parent=27 // pred_region
          %p234 = scmp.lt.s32.totalorder %s23, 1
          %s235 = scalar_select %p234, %s23, 1
          %p236 = scmp.lt.s32.totalorder %s24, 3
          %s237 = scalar_select %p236, %s24, 3
          %s238 = smul.addr %s237, 2
          %s239 = smul.addr %s235, 8
          %s240 = sadd.s32 %s238, %s239
          %s241 = smul.addr %s240, 8
          %s242 = scalar_lea.vmem %s0, %s241
        $region32: #{tpu_custom_call.1} parent=27 // pred_fallthru
          _
      $region28: #{tpu_custom_call.1} parent=5 // pred_fallthru
        _
      %p243 = scmp.le.s32.totalorder 1, %s16
      %p244 = scmp.lt.s32.totalorder %s16, 9
      %p245 = pnand %p243, %p244
      %p246 = pneg %p245
      // Predicated region
      $region33: #{tpu_custom_call.1} parent=5 // pred_check
        _
      $region34: #{tpu_custom_call.1} parent=5 // pred_check_branch
        %248 = sbr.rel (%p245) target = $region36
      $region35: #{tpu_custom_call.1} parent=5 // pred_region
        %s249 = ssub.s32 %s16, 1
        %p250 = scmp.lt.s32.totalorder %s25, 1
        %s251 = scalar_select %p250, %s25, 1
        %p252 = scmp.lt.s32.totalorder %s26, 3
        %s253 = scalar_select %p252, %s26, 3
        %s254 = smul.addr %s253, 2
        %s255 = smul.addr %s251, 8
        %s256 = sadd.s32 %s254, %s255
        %s257 = smul.addr %s256, 8
        %s258 = scalar_lea.vmem %s0, %s257
        %p259 = pneg %p56
        %p260 = pneg %p53
        %p261 = pneg %p77
        %p262 = pneg %p74
        %p263 = pneg %p98
        %p264 = pneg %p95
        %p265 = pneg %p119
        %p266 = pneg %p116
        %p267 = pneg %p147
        %p268 = pneg %p144
        %s269 = sand.u32 %s134, 1
        %s270 = scalar_lea.sflag [#allocation3], %s269
        %s271 = sand.u32 %s134, 1
        %s272 = smul.addr %s271, 8
        %s273 = scalar_lea.vmem [#allocation2], %s272
        %p274 = pneg %p175
        %p275 = pneg %p172
        %p276 = scmp.lt.s32.totalorder %s25, 1
        %s277 = scalar_select %p276, %s25, 1
        %p278 = scmp.lt.s32.totalorder %s26, 3
        %s279 = scalar_select %p278, %s26, 3
        %s280 = smul.addr %s279, 2
        %s281 = smul.addr %s277, 8
        %s282 = sadd.s32 %s280, %s281
        %s283 = smul.addr %s282, 8
        %s284 = scalar_lea.vmem %s5, %s283
        %p285 = pneg %p203
        %p286 = pneg %p200
        %p287 = scmp.lt.s32.totalorder %s25, 1
        %s288 = scalar_select %p287, %s25, 1
        %p289 = scmp.lt.s32.totalorder %s26, 3
        %s290 = scalar_select %p289, %s26, 3
        %s291 = smul.addr %s290, 2
        %s292 = smul.addr %s288, 8
        %s293 = sadd.s32 %s291, %s292
        %s294 = smul.addr %s293, 8
        %s295 = scalar_lea.vmem %s6, %s294
        %p296 = scmp.lt.s32.totalorder %s25, 1
        %s297 = scalar_select %p296, %s25, 1
        %p298 = scmp.lt.s32.totalorder %s26, 3
        %s299 = scalar_select %p298, %s26, 3
        %s300 = smul.addr %s299, 2
        %s301 = smul.addr %s297, 8
        %s302 = sadd.s32 %s300, %s301
        %s303 = smul.addr %s302, 8
        %s304 = scalar_lea.vmem %s0, %s303
        %p305 = scmp.lt.s32.totalorder %s25, 1
        %s306 = scalar_select %p305, %s25, 1
        %p307 = scmp.lt.s32.totalorder %s26, 3
        %s308 = scalar_select %p307, %s26, 3
        %s309 = smul.addr %s308, 2
        %s310 = smul.addr %s306, 8
        %s311 = sadd.s32 %s309, %s310
        %s312 = smul.addr %s311, 8
        %s313 = scalar_lea.vmem %s5, %s312
        %p314 = scmp.lt.s32.totalorder %s25, 1
        %s315 = scalar_select %p314, %s25, 1
        %p316 = scmp.lt.s32.totalorder %s26, 3
        %s317 = scalar_select %p316, %s26, 3
        %s318 = smul.addr %s317, 2
        %s319 = smul.addr %s315, 8
        %s320 = sadd.s32 %s318, %s319
        %s321 = smul.addr %s320, 8
        %s322 = scalar_lea.vmem %s6, %s321
        %v323 = vld [vmem:[%s2] sm:$0xff]
        %v324 = vld [vmem:[%s2 + $0x8] sm:$0xff]
        %326 = vset.pattern.permute.xlu0 0
        %327 = vperm.xlu0 %326, %v323
        %v328 = vpop.permute.xlu0 %327
        %331 = vset.pattern.permute.xlu0 0
        %332 = vperm.xlu0 %331, %v324
        %v333 = vpop.permute.xlu0 %332
        %v335 = vld [vmem:[%s304] sm:$0xff]
        %v336 = vld [vmem:[%s1] sm:$0xff]
        %v337 = vld [vmem:[%s1 + $0x8] sm:$0xff]
        %vm338 = vcmask 64512
        %v340 = vsel %vm338, %v336, 0
        %v343 = vsel %vm338, %v337, 0
        %345 = vmatprep.subr.mxu0 0.0
        %346 = vmatpush1.msra.mxu0 %v335
        %347 = vmatprep.subr.mxu0 0.0
        %348 = vmatpush1.msra.mxu0 0.0
        %349 = vmatprep.subr.mxu0 0.0
        %350 = vmatpush1.msra.mxu0 0.0
        %351 = vmatprep.subr.mxu0 0.0
        %352 = vmatpush1.msra.mxu0 0.0
        %353 = vmatprep.subr.mxu0 0.0
        %354 = vmatpush1.msra.mxu0 0.0
        %355 = vmatprep.subr.mxu0 0.0
        %356 = vmatpush1.msra.mxu0 0.0
        %357 = vmatprep.subr.mxu0 0.0
        %358 = vmatpush1.msra.mxu0 0.0
        %359 = vmatprep.subr.mxu0 0.0
        %360 = vmatpush1.msra.mxu0 0.0
        %361 = vmatprep.subr.mxu0 0.0
        %362 = vmatpush1.msra.mxu0 0.0
        %363 = vmatprep.subr.mxu0 0.0
        %364 = vmatpush1.msra.mxu0 0.0
        %365 = vmatprep.subr.mxu0 0.0
        %366 = vmatpush1.msra.mxu0 0.0
        %367 = vmatprep.subr.mxu0 0.0
        %368 = vmatpush1.msra.mxu0 0.0
        %369 = vmatprep.subr.mxu0 0.0
        %370 = vmatpush1.msra.mxu0 0.0
        %371 = vmatprep.subr.mxu0 0.0
        %372 = vmatpush1.msra.mxu0 0.0
        %373 = vmatprep.subr.mxu0 0.0
        %374 = vmatpush1.msra.mxu0 0.0
        %375 = vmatprep.subr.mxu0 0.0
        %376 = vmatpush1.msra.mxu0 0.0
        %377 = vmatprep.subr.mxu0 0.0
        %378 = vmatpush1.msra.mxu0 0.0
        %379 = vmatprep.subr.mxu0 0.0
        %380 = vmatpush1.msra.mxu0 0.0
        %381 = vmatprep.subr.mxu0 0.0
        %382 = vmatpush1.msra.mxu0 0.0
        %383 = vmatprep.subr.mxu0 0.0
        %384 = vmatpush1.msra.mxu0 0.0
        %385 = vmatprep.subr.mxu0 0.0
        %386 = vmatpush1.msra.mxu0 0.0
        %387 = vmatprep.subr.mxu0 0.0
        %388 = vmatpush1.msra.mxu0 0.0
        %389 = vmatprep.subr.mxu0 0.0
        %390 = vmatpush1.msra.mxu0 0.0
        %391 = vmatprep.subr.mxu0 0.0
        %392 = vmatpush1.msra.mxu0 0.0
        %393 = vmatprep.subr.mxu0 0.0
        %394 = vmatpush1.msra.mxu0 0.0
        %395 = vmatprep.subr.mxu0 0.0
        %396 = vmatpush1.msra.mxu0 0.0
        %397 = vmatprep.subr.mxu0 0.0
        %398 = vmatpush1.msra.mxu0 0.0
        %399 = vmatprep.subr.mxu0 0.0
        %400 = vmatpush1.msra.mxu0 0.0
        %401 = vmatprep.subr.mxu0 0.0
        %402 = vmatpush1.msra.mxu0 0.0
        %403 = vmatprep.subr.mxu0 0.0
        %404 = vmatpush1.msra.mxu0 0.0
        %405 = vmatprep.subr.mxu0 0.0
        %406 = vmatpush1.msra.mxu0 0.0
        %407 = vmatprep.subr.mxu0 0.0
        %408 = vmatpush1.msra.mxu0 0.0
        %409 = vmatprep.mubr.f32.mxu0 0.0
        %410 = vmatmul.mubr.f32.gmra.mrb[0].mxu0 %v340
        %v411 = vpop.f32.mrb[0].mxu0
        %v412 = vadd.f32 0.0, %v411
        %v413 = vpop.f32.mrb[0].mxu0
        %414 = vmatprep.mubr.f32.mxu0 0.0
        %415 = vmatmul.mubr.f32.gmra.mrb[0].mxu0 %v343
        %v416 = vpop.f32.mrb[0].mxu0
        %v417 = vadd.f32 0.0, %v416
        %v418 = vpop.f32.mrb[0].mxu0
        %419 = vdwg.mxu0
        %v420 = vadd.f32 %v328, %v412
        %v421 = vadd.f32 %v333, %v417
        %v422 = vld [vmem:[%s304] sm:$0xff]
        %v423 = vld [vmem:[%s304 + $0x8] sm:$0xff]
        %s424 = scalar_lea.vmem %s1, 16
        %v425 = vld [vmem:[%s424] sm:$0xff]
        %v426 = vld [vmem:[%s424 + $0x8] sm:$0xff]
        %429 = vrot.lane.b32.xlu0 %v422, 127
        %v430 = vpop.permute.xlu0 %429
        %431 = vrot.lane.b32.xlu0 %v423, 127
        %v432 = vpop.permute.xlu0 %431
        %vm433 = vcmask 1039360
        %v434 = vsel %vm433, %v430, %v432
        %v437 = vsel %vm338, %v425, 0
        %v440 = vsel %vm338, %v426, 0
        %442 = vmatprep.subr.mxu0 0.0
        %443 = vmatpush1.msra.mxu0 %v434
        %444 = vmatprep.subr.mxu0 0.0
        %445 = vmatpush1.msra.mxu0 0.0
        %446 = vmatprep.subr.mxu0 0.0
        %447 = vmatpush1.msra.mxu0 0.0
        %448 = vmatprep.subr.mxu0 0.0
        %449 = vmatpush1.msra.mxu0 0.0
        %450 = vmatprep.subr.mxu0 0.0
        %451 = vmatpush1.msra.mxu0 0.0
        %452 = vmatprep.subr.mxu0 0.0
        %453 = vmatpush1.msra.mxu0 0.0
        %454 = vmatprep.subr.mxu0 0.0
        %455 = vmatpush1.msra.mxu0 0.0
        %456 = vmatprep.subr.mxu0 0.0
        %457 = vmatpush1.msra.mxu0 0.0
        %458 = vmatprep.subr.mxu0 0.0
        %459 = vmatpush1.msra.mxu0 0.0
        %460 = vmatprep.subr.mxu0 0.0
        %461 = vmatpush1.msra.mxu0 0.0
        %462 = vmatprep.subr.mxu0 0.0
        %463 = vmatpush1.msra.mxu0 0.0
        %464 = vmatprep.subr.mxu0 0.0
        %465 = vmatpush1.msra.mxu0 0.0
        %466 = vmatprep.subr.mxu0 0.0
        %467 = vmatpush1.msra.mxu0 0.0
        %468 = vmatprep.subr.mxu0 0.0
        %469 = vmatpush1.msra.mxu0 0.0
        %470 = vmatprep.subr.mxu0 0.0
        %471 = vmatpush1.msra.mxu0 0.0
        %472 = vmatprep.subr.mxu0 0.0
        %473 = vmatpush1.msra.mxu0 0.0
        %474 = vmatprep.subr.mxu0 0.0
        %475 = vmatpush1.msra.mxu0 0.0
        %476 = vmatprep.subr.mxu0 0.0
        %477 = vmatpush1.msra.mxu0 0.0
        %478 = vmatprep.subr.mxu0 0.0
        %479 = vmatpush1.msra.mxu0 0.0
        %480 = vmatprep.subr.mxu0 0.0
        %481 = vmatpush1.msra.mxu0 0.0
        %482 = vmatprep.subr.mxu0 0.0
        %483 = vmatpush1.msra.mxu0 0.0
        %484 = vmatprep.subr.mxu0 0.0
        %485 = vmatpush1.msra.mxu0 0.0
        %486 = vmatprep.subr.mxu0 0.0
        %487 = vmatpush1.msra.mxu0 0.0
        %488 = vmatprep.subr.mxu0 0.0
        %489 = vmatpush1.msra.mxu0 0.0
        %490 = vmatprep.subr.mxu0 0.0
        %491 = vmatpush1.msra.mxu0 0.0
        %492 = vmatprep.subr.mxu0 0.0
        %493 = vmatpush1.msra.mxu0 0.0
        %494 = vmatprep.subr.mxu0 0.0
        %495 = vmatpush1.msra.mxu0 0.0
        %496 = vmatprep.subr.mxu0 0.0
        %497 = vmatpush1.msra.mxu0 0.0
        %498 = vmatprep.subr.mxu0 0.0
        %499 = vmatpush1.msra.mxu0 0.0
        %500 = vmatprep.subr.mxu0 0.0
        %501 = vmatpush1.msra.mxu0 0.0
        %502 = vmatprep.subr.mxu0 0.0
        %503 = vmatpush1.msra.mxu0 0.0
        %504 = vmatprep.subr.mxu0 0.0
        %505 = vmatpush1.msra.mxu0 0.0
        %506 = vmatprep.mubr.f32.mxu0 0.0
        %507 = vmatmul.mubr.f32.gmra.mrb[0].mxu0 %v437
        %v508 = vpop.f32.mrb[0].mxu0
        %v509 = vadd.f32 0.0, %v508
        %v510 = vpop.f32.mrb[0].mxu0
        %511 = vmatprep.mubr.f32.mxu0 0.0
        %512 = vmatmul.mubr.f32.gmra.mrb[0].mxu0 %v440
        %v513 = vpop.f32.mrb[0].mxu0
        %v514 = vadd.f32 0.0, %v513
        %v515 = vpop.f32.mrb[0].mxu0
        %516 = vdwg.mxu0
        %v517 = vadd.f32 %v420, %v509
        %v518 = vadd.f32 %v421, %v514
        %s519 = scalar_lea.vmem %s1, 32
        %v520 = vld [vmem:[%s519] sm:$0xff]
        %v521 = vld [vmem:[%s519 + $0x8] sm:$0xff]
        %522 = vrot.lane.b32.xlu0 %v422, 126
        %v523 = vpop.permute.xlu0 %522
        %524 = vrot.lane.b32.xlu0 %v423, 126
        %v525 = vpop.permute.xlu0 %524
        %vm526 = vcmask 1031168
        %v527 = vsel %vm526, %v523, %v525
        %v530 = vsel %vm338, %v520, 0
        %v533 = vsel %vm338, %v521, 0
        %535 = vmatprep.subr.mxu0 0.0
        %536 = vmatpush1.msra.mxu0 %v527
        %537 = vmatprep.subr.mxu0 0.0
        %538 = vmatpush1.msra.mxu0 0.0
        %539 = vmatprep.subr.mxu0 0.0
        %540 = vmatpush1.msra.mxu0 0.0
        %541 = vmatprep.subr.mxu0 0.0
        %542 = vmatpush1.msra.mxu0 0.0
        %543 = vmatprep.subr.mxu0 0.0
        %544 = vmatpush1.msra.mxu0 0.0
        %545 = vmatprep.subr.mxu0 0.0
        %546 = vmatpush1.msra.mxu0 0.0
        %547 = vmatprep.subr.mxu0 0.0
        %548 = vmatpush1.msra.mxu0 0.0
        %549 = vmatprep.subr.mxu0 0.0
        %550 = vmatpush1.msra.mxu0 0.0
        %551 = vmatprep.subr.mxu0 0.0
        %552 = vmatpush1.msra.mxu0 0.0
        %553 = vmatprep.subr.mxu0 0.0
        %554 = vmatpush1.msra.mxu0 0.0
        %555 = vmatprep.subr.mxu0 0.0
        %556 = vmatpush1.msra.mxu0 0.0
        %557 = vmatprep.subr.mxu0 0.0
        %558 = vmatpush1.msra.mxu0 0.0
        %559 = vmatprep.subr.mxu0 0.0
        %560 = vmatpush1.msra.mxu0 0.0
        %561 = vmatprep.subr.mxu0 0.0
        %562 = vmatpush1.msra.mxu0 0.0
        %563 = vmatprep.subr.mxu0 0.0
        %564 = vmatpush1.msra.mxu0 0.0
        %565 = vmatprep.subr.mxu0 0.0
        %566 = vmatpush1.msra.mxu0 0.0
        %567 = vmatprep.subr.mxu0 0.0
        %568 = vmatpush1.msra.mxu0 0.0
        %569 = vmatprep.subr.mxu0 0.0
        %570 = vmatpush1.msra.mxu0 0.0
        %571 = vmatprep.subr.mxu0 0.0
        %572 = vmatpush1.msra.mxu0 0.0
        %573 = vmatprep.subr.mxu0 0.0
        %574 = vmatpush1.msra.mxu0 0.0
        %575 = vmatprep.subr.mxu0 0.0
        %576 = vmatpush1.msra.mxu0 0.0
        %577 = vmatprep.subr.mxu0 0.0
        %578 = vmatpush1.msra.mxu0 0.0
        %579 = vmatprep.subr.mxu0 0.0
        %580 = vmatpush1.msra.mxu0 0.0
        %581 = vmatprep.subr.mxu0 0.0
        %582 = vmatpush1.msra.mxu0 0.0
        %583 = vmatprep.subr.mxu0 0.0
        %584 = vmatpush1.msra.mxu0 0.0
        %585 = vmatprep.subr.mxu0 0.0
        %586 = vmatpush1.msra.mxu0 0.0
        %587 = vmatprep.subr.mxu0 0.0
        %588 = vmatpush1.msra.mxu0 0.0
        %589 = vmatprep.subr.mxu0 0.0
        %590 = vmatpush1.msra.mxu0 0.0
        %591 = vmatprep.subr.mxu0 0.0
        %592 = vmatpush1.msra.mxu0 0.0
        %593 = vmatprep.subr.mxu0 0.0
        %594 = vmatpush1.msra.mxu0 0.0
        %595 = vmatprep.subr.mxu0 0.0
        %596 = vmatpush1.msra.mxu0 0.0
        %597 = vmatprep.subr.mxu0 0.0
        %598 = vmatpush1.msra.mxu0 0.0
        %599 = vmatprep.mubr.f32.mxu0 0.0
        %600 = vmatmul.mubr.f32.gmra.mrb[0].mxu0 %v530
        %v601 = vpop.f32.mrb[0].mxu0
        %v602 = vadd.f32 0.0, %v601
        %v603 = vpop.f32.mrb[0].mxu0
        %604 = vmatprep.mubr.f32.mxu0 0.0
        %605 = vmatmul.mubr.f32.gmra.mrb[0].mxu0 %v533
        %v606 = vpop.f32.mrb[0].mxu0
        %v607 = vadd.f32 0.0, %v606
        %v608 = vpop.f32.mrb[0].mxu0
        %609 = vdwg.mxu0
        %v610 = vadd.f32 %v517, %v602
        %v611 = vadd.f32 %v518, %v607
        %s612 = scalar_lea.vmem %s1, 48
        %v613 = vld [vmem:[%s612] sm:$0xff]
        %v614 = vld [vmem:[%s612 + $0x8] sm:$0xff]
        %615 = vrot.lane.b32.xlu0 %v422, 118
        %v616 = vpop.permute.xlu0 %615
        %617 = vrot.lane.b32.xlu0 %v423, 118
        %v618 = vpop.permute.xlu0 %617
        %vm619 = vcmask 965632
        %v620 = vsel %vm619, %v616, %v618
        %v623 = vsel %vm338, %v613, 0
        %v626 = vsel %vm338, %v614, 0
        %628 = vmatprep.subr.mxu0 0.0
        %629 = vmatpush1.msra.mxu0 %v620
        %630 = vmatprep.subr.mxu0 0.0
        %631 = vmatpush1.msra.mxu0 0.0
        %632 = vmatprep.subr.mxu0 0.0
        %633 = vmatpush1.msra.mxu0 0.0
        %634 = vmatprep.subr.mxu0 0.0
        %635 = vmatpush1.msra.mxu0 0.0
        %636 = vmatprep.subr.mxu0 0.0
        %637 = vmatpush1.msra.mxu0 0.0
        %638 = vmatprep.subr.mxu0 0.0
        %639 = vmatpush1.msra.mxu0 0.0
        %640 = vmatprep.subr.mxu0 0.0
        %641 = vmatpush1.msra.mxu0 0.0
        %642 = vmatprep.subr.mxu0 0.0
        %643 = vmatpush1.msra.mxu0 0.0
        %644 = vmatprep.subr.mxu0 0.0
        %645 = vmatpush1.msra.mxu0 0.0
        %646 = vmatprep.subr.mxu0 0.0
        %647 = vmatpush1.msra.mxu0 0.0
        %648 = vmatprep.subr.mxu0 0.0
        %649 = vmatpush1.msra.mxu0 0.0
        %650 = vmatprep.subr.mxu0 0.0
        %651 = vmatpush1.msra.mxu0 0.0
        %652 = vmatprep.subr.mxu0 0.0
        %653 = vmatpush1.msra.mxu0 0.0
        %654 = vmatprep.subr.mxu0 0.0
        %655 = vmatpush1.msra.mxu0 0.0
        %656 = vmatprep.subr.mxu0 0.0
        %657 = vmatpush1.msra.mxu0 0.0
        %658 = vmatprep.subr.mxu0 0.0
        %659 = vmatpush1.msra.mxu0 0.0
        %660 = vmatprep.subr.mxu0 0.0
        %661 = vmatpush1.msra.mxu0 0.0
        %662 = vmatprep.subr.mxu0 0.0
        %663 = vmatpush1.msra.mxu0 0.0
        %664 = vmatprep.subr.mxu0 0.0
        %665 = vmatpush1.msra.mxu0 0.0
        %666 = vmatprep.subr.mxu0 0.0
        %667 = vmatpush1.msra.mxu0 0.0
        %668 = vmatprep.subr.mxu0 0.0
        %669 = vmatpush1.msra.mxu0 0.0
        %670 = vmatprep.subr.mxu0 0.0
        %671 = vmatpush1.msra.mxu0 0.0
        %672 = vmatprep.subr.mxu0 0.0
        %673 = vmatpush1.msra.mxu0 0.0
        %674 = vmatprep.subr.mxu0 0.0
        %675 = vmatpush1.msra.mxu0 0.0
        %676 = vmatprep.subr.mxu0 0.0
        %677 = vmatpush1.msra.mxu0 0.0
        %678 = vmatprep.subr.mxu0 0.0
        %679 = vmatpush1.msra.mxu0 0.0
        %680 = vmatprep.subr.mxu0 0.0
        %681 = vmatpush1.msra.mxu0 0.0
        %682 = vmatprep.subr.mxu0 0.0
        %683 = vmatpush1.msra.mxu0 0.0
        %684 = vmatprep.subr.mxu0 0.0
        %685 = vmatpush1.msra.mxu0 0.0
        %686 = vmatprep.subr.mxu0 0.0
        %687 = vmatpush1.msra.mxu0 0.0
        %688 = vmatprep.subr.mxu0 0.0
        %689 = vmatpush1.msra.mxu0 0.0
        %690 = vmatprep.subr.mxu0 0.0
        %691 = vmatpush1.msra.mxu0 0.0
        %692 = vmatprep.mubr.f32.mxu0 0.0
        %693 = vmatmul.mubr.f32.gmra.mrb[0].mxu0 %v623
        %v694 = vpop.f32.mrb[0].mxu0
        %v695 = vadd.f32 0.0, %v694
        %v696 = vpop.f32.mrb[0].mxu0
        %697 = vmatprep.mubr.f32.mxu0 0.0
        %698 = vmatmul.mubr.f32.gmra.mrb[0].mxu0 %v626
        %v699 = vpop.f32.mrb[0].mxu0
        %v700 = vadd.f32 0.0, %v699
        %v701 = vpop.f32.mrb[0].mxu0
        %702 = vdwg.mxu0
        %v703 = vadd.f32 %v610, %v695
        %v704 = vadd.f32 %v611, %v700
        %s705 = scalar_lea.vmem %s1, 64
        %v706 = vld [vmem:[%s705] sm:$0xff]
        %v707 = vld [vmem:[%s705 + $0x8] sm:$0xff]
        %708 = vrot.lane.b32.xlu0 %v422, 117
        %v709 = vpop.permute.xlu0 %708
        %710 = vrot.lane.b32.xlu0 %v423, 117
        %v711 = vpop.permute.xlu0 %710
        %vm712 = vcmask 957440
        %v713 = vsel %vm712, %v709, %v711
        %v716 = vsel %vm338, %v706, 0
        %v719 = vsel %vm338, %v707, 0
        %721 = vmatprep.subr.mxu0 0.0
        %722 = vmatpush1.msra.mxu0 %v713
        %723 = vmatprep.subr.mxu0 0.0
        %724 = vmatpush1.msra.mxu0 0.0
        %725 = vmatprep.subr.mxu0 0.0
        %726 = vmatpush1.msra.mxu0 0.0
        %727 = vmatprep.subr.mxu0 0.0
        %728 = vmatpush1.msra.mxu0 0.0
        %729 = vmatprep.subr.mxu0 0.0
        %730 = vmatpush1.msra.mxu0 0.0
        %731 = vmatprep.subr.mxu0 0.0
        %732 = vmatpush1.msra.mxu0 0.0
        %733 = vmatprep.subr.mxu0 0.0
        %734 = vmatpush1.msra.mxu0 0.0
        %735 = vmatprep.subr.mxu0 0.0
        %736 = vmatpush1.msra.mxu0 0.0
        %737 = vmatprep.subr.mxu0 0.0
        %738 = vmatpush1.msra.mxu0 0.0
        %739 = vmatprep.subr.mxu0 0.0
        %740 = vmatpush1.msra.mxu0 0.0
        %741 = vmatprep.subr.mxu0 0.0
        %742 = vmatpush1.msra.mxu0 0.0
        %743 = vmatprep.subr.mxu0 0.0
        %744 = vmatpush1.msra.mxu0 0.0
        %745 = vmatprep.subr.mxu0 0.0
        %746 = vmatpush1.msra.mxu0 0.0
        %747 = vmatprep.subr.mxu0 0.0
        %748 = vmatpush1.msra.mxu0 0.0
        %749 = vmatprep.subr.mxu0 0.0
        %750 = vmatpush1.msra.mxu0 0.0
        %751 = vmatprep.subr.mxu0 0.0
        %752 = vmatpush1.msra.mxu0 0.0
        %753 = vmatprep.subr.mxu0 0.0
        %754 = vmatpush1.msra.mxu0 0.0
        %755 = vmatprep.subr.mxu0 0.0
        %756 = vmatpush1.msra.mxu0 0.0
        %757 = vmatprep.subr.mxu0 0.0
        %758 = vmatpush1.msra.mxu0 0.0
        %759 = vmatprep.subr.mxu0 0.0
        %760 = vmatpush1.msra.mxu0 0.0
        %761 = vmatprep.subr.mxu0 0.0
        %762 = vmatpush1.msra.mxu0 0.0
        %763 = vmatprep.subr.mxu0 0.0
        %764 = vmatpush1.msra.mxu0 0.0
        %765 = vmatprep.subr.mxu0 0.0
        %766 = vmatpush1.msra.mxu0 0.0
        %767 = vmatprep.subr.mxu0 0.0
        %768 = vmatpush1.msra.mxu0 0.0
        %769 = vmatprep.subr.mxu0 0.0
        %770 = vmatpush1.msra.mxu0 0.0
        %771 = vmatprep.subr.mxu0 0.0
        %772 = vmatpush1.msra.mxu0 0.0
        %773 = vmatprep.subr.mxu0 0.0
        %774 = vmatpush1.msra.mxu0 0.0
        %775 = vmatprep.subr.mxu0 0.0
        %776 = vmatpush1.msra.mxu0 0.0
        %777 = vmatprep.subr.mxu0 0.0
        %778 = vmatpush1.msra.mxu0 0.0
        %779 = vmatprep.subr.mxu0 0.0
        %780 = vmatpush1.msra.mxu0 0.0
        %781 = vmatprep.subr.mxu0 0.0
        %782 = vmatpush1.msra.mxu0 0.0
        %783 = vmatprep.subr.mxu0 0.0
        %784 = vmatpush1.msra.mxu0 0.0
        %785 = vmatprep.mubr.f32.mxu0 0.0
        %786 = vmatmul.mubr.f32.gmra.mrb[0].mxu0 %v716
        %v787 = vpop.f32.mrb[0].mxu0
        %v788 = vadd.f32 0.0, %v787
        %v789 = vpop.f32.mrb[0].mxu0
        %790 = vmatprep.mubr.f32.mxu0 0.0
        %791 = vmatmul.mubr.f32.gmra.mrb[0].mxu0 %v719
        %v792 = vpop.f32.mrb[0].mxu0
        %v793 = vadd.f32 0.0, %v792
        %v794 = vpop.f32.mrb[0].mxu0
        %795 = vdwg.mxu0
        %v796 = vadd.f32 %v703, %v788
        %v797 = vadd.f32 %v704, %v793
        %s798 = scalar_lea.vmem %s1, 80
        %v799 = vld [vmem:[%s798] sm:$0xff]
        %v800 = vld [vmem:[%s798 + $0x8] sm:$0xff]
        %801 = vrot.lane.b32.xlu0 %v422, 116
        %v802 = vpop.permute.xlu0 %801
        %803 = vrot.lane.b32.xlu0 %v423, 116
        %v804 = vpop.permute.xlu0 %803
        %vm805 = vcmask 949248
        %v806 = vsel %vm805, %v802, %v804
        %v809 = vsel %vm338, %v799, 0
        %v812 = vsel %vm338, %v800, 0
        %814 = vmatprep.subr.mxu0 0.0
        %815 = vmatpush1.msra.mxu0 %v806
        %816 = vmatprep.subr.mxu0 0.0
        %817 = vmatpush1.msra.mxu0 0.0
        %818 = vmatprep.subr.mxu0 0.0
        %819 = vmatpush1.msra.mxu0 0.0
        %820 = vmatprep.subr.mxu0 0.0
        %821 = vmatpush1.msra.mxu0 0.0
        %822 = vmatprep.subr.mxu0 0.0
        %823 = vmatpush1.msra.mxu0 0.0
        %824 = vmatprep.subr.mxu0 0.0
        %825 = vmatpush1.msra.mxu0 0.0
        %826 = vmatprep.subr.mxu0 0.0
        %827 = vmatpush1.msra.mxu0 0.0
        %828 = vmatprep.subr.mxu0 0.0
        %829 = vmatpush1.msra.mxu0 0.0
        %830 = vmatprep.subr.mxu0 0.0
        %831 = vmatpush1.msra.mxu0 0.0
        %832 = vmatprep.subr.mxu0 0.0
        %833 = vmatpush1.msra.mxu0 0.0
        %834 = vmatprep.subr.mxu0 0.0
        %835 = vmatpush1.msra.mxu0 0.0
        %836 = vmatprep.subr.mxu0 0.0
        %837 = vmatpush1.msra.mxu0 0.0
        %838 = vmatprep.subr.mxu0 0.0
        %839 = vmatpush1.msra.mxu0 0.0
        %840 = vmatprep.subr.mxu0 0.0
        %841 = vmatpush1.msra.mxu0 0.0
        %842 = vmatprep.subr.mxu0 0.0
        %843 = vmatpush1.msra.mxu0 0.0
        %844 = vmatprep.subr.mxu0 0.0
        %845 = vmatpush1.msra.mxu0 0.0
        %846 = vmatprep.subr.mxu0 0.0
        %847 = vmatpush1.msra.mxu0 0.0
        %848 = vmatprep.subr.mxu0 0.0
        %849 = vmatpush1.msra.mxu0 0.0
        %850 = vmatprep.subr.mxu0 0.0
        %851 = vmatpush1.msra.mxu0 0.0
        %852 = vmatprep.subr.mxu0 0.0
        %853 = vmatpush1.msra.mxu0 0.0
        %854 = vmatprep.subr.mxu0 0.0
        %855 = vmatpush1.msra.mxu0 0.0
        %856 = vmatprep.subr.mxu0 0.0
        %857 = vmatpush1.msra.mxu0 0.0
        %858 = vmatprep.subr.mxu0 0.0
        %859 = vmatpush1.msra.mxu0 0.0
        %860 = vmatprep.subr.mxu0 0.0
        %861 = vmatpush1.msra.mxu0 0.0
        %862 = vmatprep.subr.mxu0 0.0
        %863 = vmatpush1.msra.mxu0 0.0
        %864 = vmatprep.subr.mxu0 0.0
        %865 = vmatpush1.msra.mxu0 0.0
        %866 = vmatprep.subr.mxu0 0.0
        %867 = vmatpush1.msra.mxu0 0.0
        %868 = vmatprep.subr.mxu0 0.0
        %869 = vmatpush1.msra.mxu0 0.0
        %870 = vmatprep.subr.mxu0 0.0
        %871 = vmatpush1.msra.mxu0 0.0
        %872 = vmatprep.subr.mxu0 0.0
        %873 = vmatpush1.msra.mxu0 0.0
        %874 = vmatprep.subr.mxu0 0.0
        %875 = vmatpush1.msra.mxu0 0.0
        %876 = vmatprep.subr.mxu0 0.0
        %877 = vmatpush1.msra.mxu0 0.0
        %878 = vmatprep.mubr.f32.mxu0 0.0
        %879 = vmatmul.mubr.f32.gmra.mrb[0].mxu0 %v809
        %v880 = vpop.f32.mrb[0].mxu0
        %v881 = vadd.f32 0.0, %v880
        %v882 = vpop.f32.mrb[0].mxu0
        %883 = vmatprep.mubr.f32.mxu0 0.0
        %884 = vmatmul.mubr.f32.gmra.mrb[0].mxu0 %v812
        %v885 = vpop.f32.mrb[0].mxu0
        %v886 = vadd.f32 0.0, %v885
        %v887 = vpop.f32.mrb[0].mxu0
        %888 = vdwg.mxu0
        %v889 = vadd.f32 %v796, %v881
        %v890 = vadd.f32 %v797, %v886
        %s891 = scalar_lea.vmem %s1, 96
        %v892 = vld [vmem:[%s891] sm:$0xff]
        %v893 = vld [vmem:[%s891 + $0x8] sm:$0xff]
        %894 = vrot.lane.b32.xlu0 %v422, 108
        %v895 = vpop.permute.xlu0 %894
        %896 = vrot.lane.b32.xlu0 %v423, 108
        %v897 = vpop.permute.xlu0 %896
        %vm898 = vcmask 883712
        %v899 = vsel %vm898, %v895, %v897
        %v902 = vsel %vm338, %v892, 0
        %v905 = vsel %vm338, %v893, 0
        %907 = vmatprep.subr.mxu0 0.0
        %908 = vmatpush1.msra.mxu0 %v899
        %909 = vmatprep.subr.mxu0 0.0
        %910 = vmatpush1.msra.mxu0 0.0
        %911 = vmatprep.subr.mxu0 0.0
        %912 = vmatpush1.msra.mxu0 0.0
        %913 = vmatprep.subr.mxu0 0.0
        %914 = vmatpush1.msra.mxu0 0.0
        %915 = vmatprep.subr.mxu0 0.0
        %916 = vmatpush1.msra.mxu0 0.0
        %917 = vmatprep.subr.mxu0 0.0
        %918 = vmatpush1.msra.mxu0 0.0
        %919 = vmatprep.subr.mxu0 0.0
        %920 = vmatpush1.msra.mxu0 0.0
        %921 = vmatprep.subr.mxu0 0.0
        %922 = vmatpush1.msra.mxu0 0.0
        %923 = vmatprep.subr.mxu0 0.0
        %924 = vmatpush1.msra.mxu0 0.0
        %925 = vmatprep.subr.mxu0 0.0
        %926 = vmatpush1.msra.mxu0 0.0
        %927 = vmatprep.subr.mxu0 0.0
        %928 = vmatpush1.msra.mxu0 0.0
        %929 = vmatprep.subr.mxu0 0.0
        %930 = vmatpush1.msra.mxu0 0.0
        %931 = vmatprep.subr.mxu0 0.0
        %932 = vmatpush1.msra.mxu0 0.0
        %933 = vmatprep.subr.mxu0 0.0
        %934 = vmatpush1.msra.mxu0 0.0
        %935 = vmatprep.subr.mxu0 0.0
        %936 = vmatpush1.msra.mxu0 0.0
        %937 = vmatprep.subr.mxu0 0.0
        %938 = vmatpush1.msra.mxu0 0.0
        %939 = vmatprep.subr.mxu0 0.0
        %940 = vmatpush1.msra.mxu0 0.0
        %941 = vmatprep.subr.mxu0 0.0
        %942 = vmatpush1.msra.mxu0 0.0
        %943 = vmatprep.subr.mxu0 0.0
        %944 = vmatpush1.msra.mxu0 0.0
        %945 = vmatprep.subr.mxu0 0.0
        %946 = vmatpush1.msra.mxu0 0.0
        %947 = vmatprep.subr.mxu0 0.0
        %948 = vmatpush1.msra.mxu0 0.0
        %949 = vmatprep.subr.mxu0 0.0
        %950 = vmatpush1.msra.mxu0 0.0
        %951 = vmatprep.subr.mxu0 0.0
        %952 = vmatpush1.msra.mxu0 0.0
        %953 = vmatprep.subr.mxu0 0.0
        %954 = vmatpush1.msra.mxu0 0.0
        %955 = vmatprep.subr.mxu0 0.0
        %956 = vmatpush1.msra.mxu0 0.0
        %957 = vmatprep.subr.mxu0 0.0
        %958 = vmatpush1.msra.mxu0 0.0
        %959 = vmatprep.subr.mxu0 0.0
        %960 = vmatpush1.msra.mxu0 0.0
        %961 = vmatprep.subr.mxu0 0.0
        %962 = vmatpush1.msra.mxu0 0.0
        %963 = vmatprep.subr.mxu0 0.0
        %964 = vmatpush1.msra.mxu0 0.0
        %965 = vmatprep.subr.mxu0 0.0
        %966 = vmatpush1.msra.mxu0 0.0
        %967 = vmatprep.subr.mxu0 0.0
        %968 = vmatpush1.msra.mxu0 0.0
        %969 = vmatprep.subr.mxu0 0.0
        %970 = vmatpush1.msra.mxu0 0.0
        %971 = vmatprep.mubr.f32.mxu0 0.0
        %972 = vmatmul.mubr.f32.gmra.mrb[0].mxu0 %v902
        %v973 = vpop.f32.mrb[0].mxu0
        %v974 = vadd.f32 0.0, %v973
        %v975 = vpop.f32.mrb[0].mxu0
        %976 = vmatprep.mubr.f32.mxu0 0.0
        %977 = vmatmul.mubr.f32.gmra.mrb[0].mxu0 %v905
        %v978 = vpop.f32.mrb[0].mxu0
        %v979 = vadd.f32 0.0, %v978
        %v980 = vpop.f32.mrb[0].mxu0
        %981 = vdwg.mxu0
        %v982 = vadd.f32 %v889, %v974
        %v983 = vadd.f32 %v890, %v979
        %s984 = scalar_lea.vmem %s1, 112
        %v985 = vld [vmem:[%s984] sm:$0xff]
        %v986 = vld [vmem:[%s984 + $0x8] sm:$0xff]
        %987 = vrot.lane.b32.xlu0 %v422, 107
        %v988 = vpop.permute.xlu0 %987
        %989 = vrot.lane.b32.xlu0 %v423, 107
        %v990 = vpop.permute.xlu0 %989
        %vm991 = vcmask 875520
        %v992 = vsel %vm991, %v988, %v990
        %v995 = vsel %vm338, %v985, 0
        %v998 = vsel %vm338, %v986, 0
        %1000 = vmatprep.subr.mxu0 0.0
        %1001 = vmatpush1.msra.mxu0 %v992
        %1002 = vmatprep.subr.mxu0 0.0
        %1003 = vmatpush1.msra.mxu0 0.0
        %1004 = vmatprep.subr.mxu0 0.0
        %1005 = vmatpush1.msra.mxu0 0.0
        %1006 = vmatprep.subr.mxu0 0.0
        %1007 = vmatpush1.msra.mxu0 0.0
        %1008 = vmatprep.subr.mxu0 0.0
        %1009 = vmatpush1.msra.mxu0 0.0
        %1010 = vmatprep.subr.mxu0 0.0
        %1011 = vmatpush1.msra.mxu0 0.0
        %1012 = vmatprep.subr.mxu0 0.0
        %1013 = vmatpush1.msra.mxu0 0.0
        %1014 = vmatprep.subr.mxu0 0.0
        %1015 = vmatpush1.msra.mxu0 0.0
        %1016 = vmatprep.subr.mxu0 0.0
        %1017 = vmatpush1.msra.mxu0 0.0
        %1018 = vmatprep.subr.mxu0 0.0
        %1019 = vmatpush1.msra.mxu0 0.0
        %1020 = vmatprep.subr.mxu0 0.0
        %1021 = vmatpush1.msra.mxu0 0.0
        %1022 = vmatprep.subr.mxu0 0.0
        %1023 = vmatpush1.msra.mxu0 0.0
        %1024 = vmatprep.subr.mxu0 0.0
        %1025 = vmatpush1.msra.mxu0 0.0
        %1026 = vmatprep.subr.mxu0 0.0
        %1027 = vmatpush1.msra.mxu0 0.0
        %1028 = vmatprep.subr.mxu0 0.0
        %1029 = vmatpush1.msra.mxu0 0.0
        %1030 = vmatprep.subr.mxu0 0.0
        %1031 = vmatpush1.msra.mxu0 0.0
        %1032 = vmatprep.subr.mxu0 0.0
        %1033 = vmatpush1.msra.mxu0 0.0
        %1034 = vmatprep.subr.mxu0 0.0
        %1035 = vmatpush1.msra.mxu0 0.0
        %1036 = vmatprep.subr.mxu0 0.0
        %1037 = vmatpush1.msra.mxu0 0.0
        %1038 = vmatprep.subr.mxu0 0.0
        %1039 = vmatpush1.msra.mxu0 0.0
        %1040 = vmatprep.subr.mxu0 0.0
        %1041 = vmatpush1.msra.mxu0 0.0
        %1042 = vmatprep.subr.mxu0 0.0
        %1043 = vmatpush1.msra.mxu0 0.0
        %1044 = vmatprep.subr.mxu0 0.0
        %1045 = vmatpush1.msra.mxu0 0.0
        %1046 = vmatprep.subr.mxu0 0.0
        %1047 = vmatpush1.msra.mxu0 0.0
        %1048 = vmatprep.subr.mxu0 0.0
        %1049 = vmatpush1.msra.mxu0 0.0
        %1050 = vmatprep.subr.mxu0 0.0
        %1051 = vmatpush1.msra.mxu0 0.0
        %1052 = vmatprep.subr.mxu0 0.0
        %1053 = vmatpush1.msra.mxu0 0.0
        %1054 = vmatprep.subr.mxu0 0.0
        %1055 = vmatpush1.msra.mxu0 0.0
        %1056 = vmatprep.subr.mxu0 0.0
        %1057 = vmatpush1.msra.mxu0 0.0
        %1058 = vmatprep.subr.mxu0 0.0
        %1059 = vmatpush1.msra.mxu0 0.0
        %1060 = vmatprep.subr.mxu0 0.0
        %1061 = vmatpush1.msra.mxu0 0.0
        %1062 = vmatprep.subr.mxu0 0.0
        %1063 = vmatpush1.msra.mxu0 0.0
        %1064 = vmatprep.mubr.f32.mxu0 0.0
        %1065 = vmatmul.mubr.f32.gmra.mrb[0].mxu0 %v995
        %v1066 = vpop.f32.mrb[0].mxu0
        %v1067 = vadd.f32 0.0, %v1066
        %v1068 = vpop.f32.mrb[0].mxu0
        %1069 = vmatprep.mubr.f32.mxu0 0.0
        %1070 = vmatmul.mubr.f32.gmra.mrb[0].mxu0 %v998
        %v1071 = vpop.f32.mrb[0].mxu0
        %v1072 = vadd.f32 0.0, %v1071
        %v1073 = vpop.f32.mrb[0].mxu0
        %1074 = vdwg.mxu0
        %v1075 = vadd.f32 %v982, %v1067
        %v1076 = vadd.f32 %v983, %v1072
        %s1077 = scalar_lea.vmem %s1, 128
        %v1078 = vld [vmem:[%s1077] sm:$0xff]
        %v1079 = vld [vmem:[%s1077 + $0x8] sm:$0xff]
        %1080 = vrot.lane.b32.xlu0 %v422, 106
        %v1081 = vpop.permute.xlu0 %1080
        %1082 = vrot.lane.b32.xlu0 %v423, 106
        %v1083 = vpop.permute.xlu0 %1082
        %vm1084 = vcmask 867328
        %v1085 = vsel %vm1084, %v1081, %v1083
        %v1088 = vsel %vm338, %v1078, 0
        %v1091 = vsel %vm338, %v1079, 0
        %1093 = vmatprep.subr.mxu0 0.0
        %1094 = vmatpush1.msra.mxu0 %v1085
        %1095 = vmatprep.subr.mxu0 0.0
        %1096 = vmatpush1.msra.mxu0 0.0
        %1097 = vmatprep.subr.mxu0 0.0
        %1098 = vmatpush1.msra.mxu0 0.0
        %1099 = vmatprep.subr.mxu0 0.0
        %1100 = vmatpush1.msra.mxu0 0.0
        %1101 = vmatprep.subr.mxu0 0.0
        %1102 = vmatpush1.msra.mxu0 0.0
        %1103 = vmatprep.subr.mxu0 0.0
        %1104 = vmatpush1.msra.mxu0 0.0
        %1105 = vmatprep.subr.mxu0 0.0
        %1106 = vmatpush1.msra.mxu0 0.0
        %1107 = vmatprep.subr.mxu0 0.0
        %1108 = vmatpush1.msra.mxu0 0.0
        %1109 = vmatprep.subr.mxu0 0.0
        %1110 = vmatpush1.msra.mxu0 0.0
        %1111 = vmatprep.subr.mxu0 0.0
        %1112 = vmatpush1.msra.mxu0 0.0
        %1113 = vmatprep.subr.mxu0 0.0
        %1114 = vmatpush1.msra.mxu0 0.0
        %1115 = vmatprep.subr.mxu0 0.0
        %1116 = vmatpush1.msra.mxu0 0.0
        %1117 = vmatprep.subr.mxu0 0.0
        %1118 = vmatpush1.msra.mxu0 0.0
        %1119 = vmatprep.subr.mxu0 0.0
        %1120 = vmatpush1.msra.mxu0 0.0
        %1121 = vmatprep.subr.mxu0 0.0
        %1122 = vmatpush1.msra.mxu0 0.0
        %1123 = vmatprep.subr.mxu0 0.0
        %1124 = vmatpush1.msra.mxu0 0.0
        %1125 = vmatprep.subr.mxu0 0.0
        %1126 = vmatpush1.msra.mxu0 0.0
        %1127 = vmatprep.subr.mxu0 0.0
        %1128 = vmatpush1.msra.mxu0 0.0
        %1129 = vmatprep.subr.mxu0 0.0
        %1130 = vmatpush1.msra.mxu0 0.0
        %1131 = vmatprep.subr.mxu0 0.0
        %1132 = vmatpush1.msra.mxu0 0.0
        %1133 = vmatprep.subr.mxu0 0.0
        %1134 = vmatpush1.msra.mxu0 0.0
        %1135 = vmatprep.subr.mxu0 0.0
        %1136 = vmatpush1.msra.mxu0 0.0
        %1137 = vmatprep.subr.mxu0 0.0
        %1138 = vmatpush1.msra.mxu0 0.0
        %1139 = vmatprep.subr.mxu0 0.0
        %1140 = vmatpush1.msra.mxu0 0.0
        %1141 = vmatprep.subr.mxu0 0.0
        %1142 = vmatpush1.msra.mxu0 0.0
        %1143 = vmatprep.subr.mxu0 0.0
        %1144 = vmatpush1.msra.mxu0 0.0
        %1145 = vmatprep.subr.mxu0 0.0
        %1146 = vmatpush1.msra.mxu0 0.0
        %1147 = vmatprep.subr.mxu0 0.0
        %1148 = vmatpush1.msra.mxu0 0.0
        %1149 = vmatprep.subr.mxu0 0.0
        %1150 = vmatpush1.msra.mxu0 0.0
        %1151 = vmatprep.subr.mxu0 0.0
        %1152 = vmatpush1.msra.mxu0 0.0
        %1153 = vmatprep.subr.mxu0 0.0
        %1154 = vmatpush1.msra.mxu0 0.0
        %1155 = vmatprep.subr.mxu0 0.0
        %1156 = vmatpush1.msra.mxu0 0.0
        %1157 = vmatprep.mubr.f32.mxu0 0.0
        %1158 = vmatmul.mubr.f32.gmra.mrb[0].mxu0 %v1088
        %v1159 = vpop.f32.mrb[0].mxu0
        %v1160 = vadd.f32 0.0, %v1159
        %v1161 = vpop.f32.mrb[0].mxu0
        %1162 = vmatprep.mubr.f32.mxu0 0.0
        %1163 = vmatmul.mubr.f32.gmra.mrb[0].mxu0 %v1091
        %v1164 = vpop.f32.mrb[0].mxu0
        %v1165 = vadd.f32 0.0, %v1164
        %v1166 = vpop.f32.mrb[0].mxu0
        %1167 = vdwg.mxu0
        %v1168 = vadd.f32 %v1075, %v1160
        %v1169 = vadd.f32 %v1076, %v1165
        %v1170 = vpack.c.bf16 %v1169, %v1168
        %v1172 = vunpack.c.l.b16 %v1170
        %v1173 = vunpack.c.h.b16 %v1170
        %v1174 = vpack.c.b16 %v1172, %v1172
        %v1175 = vpack.c.b16 %v1173, %v1173
        %1178 = vst [vmem:[%s273] sm:$0xf] %v1174
        %1179 = vst [vmem:[%s273 + $0x4] sm:$0xf] %v1175
        %v1180 = vld [vmem:[%s3] sm:$0x1]
        %v1182 = vlaneseq
        %v1183 = vshrl.u32 %v1182, 7
        %v1184 = vsub.s32 0, %v1183
        %v1185 = vrot.slane %v1180, %v1184
        %v1187 = vmul.f32 %v1168, %v1185
        %v1188 = vmul.f32 %v1169, %v1185
        %1189 = vadd.xlane.f32.xlu0 %v1187
        %v1190 = vpop.xlane.xlu0 %1189
        %1191 = vadd.xlane.f32.xlu0 %v1188
        %v1192 = vpop.xlane.xlu0 %1191
        %vm1193 = vcmask 7168
        %1194 = vst.msk [vmem:[%s313] sm:$0xff] %vm1193, %v1190
        %1195 = vst.msk [vmem:[%s313 + $0x8] sm:$0xff] %vm1193, %v1192
        %v1196 = vmul.f32 %v1187, %v1168
        %v1197 = vmul.f32 %v1188, %v1169
        %1198 = vadd.xlane.f32.xlu0 %v1196
        %v1199 = vpop.xlane.xlu0 %1198
        %1200 = vadd.xlane.f32.xlu0 %v1197
        %v1201 = vpop.xlane.xlu0 %1200
        %1202 = vst.msk [vmem:[%s322] sm:$0xff] %vm1193, %v1199
        %1203 = vst.msk [vmem:[%s322 + $0x8] sm:$0xff] %vm1193, %v1201
        %s1204 = sand.u32 %s134, 1
        %s1205 = scalar_lea.sflag [#allocation3], %s1204
        %s1206 = sand.u32 %s134, 1
        %s1207 = smul.addr %s1206, 8
        %s1208 = scalar_lea.vmem [#allocation2], %s1207
        %p1209 = scmp.lt.s32.totalorder %s25, 1
        %s1210 = scalar_select %p1209, %s25, 1
        %p1211 = scmp.lt.s32.totalorder %s26, 3
        %s1212 = scalar_select %p1211, %s26, 3
        %s1213 = smul.addr %s1212, 2
        %s1214 = smul.addr %s1210, 8
        %s1215 = sadd.s32 %s1213, %s1214
        %s1216 = smul.addr %s1215, 8
        %s1217 = scalar_lea.vmem %s5, %s1216
        %p1218 = scmp.lt.s32.totalorder %s25, 1
        %s1219 = scalar_select %p1218, %s25, 1
        %p1220 = scmp.lt.s32.totalorder %s26, 3
        %s1221 = scalar_select %p1220, %s26, 3
        %s1222 = smul.addr %s1221, 2
        %s1223 = smul.addr %s1219, 8
        %s1224 = sadd.s32 %s1222, %s1223
        %s1225 = smul.addr %s1224, 8
        %s1226 = scalar_lea.vmem %s6, %s1225
        // Predicated region
        $region37: #{tpu_custom_call.1} parent=35 // pred_check
          %p1227 = pneg %p144
        $region38: #{tpu_custom_call.1} parent=35 // pred_check_branch
          %1229 = sbr.rel (%p1227) target = $region40
        $region39: #{tpu_custom_call.1} parent=35 // pred_region
          %s1231 = ssub.s32 128, 128
          %1232 = vsyncadd %s1205, %s1231
          %s1233 = smul.addr %s26, 2
          %s1234 = smul.addr %s25, 8
          %s1235 = sadd.s32 %s1233, %s1234
          %s1236 = smul.addr %s1235, 64
          %s1237 = scalar_lea.hbm %s4, %s1236
          %s1238 = sshll.u32 %s1208, 4
          %s1239 = int_to_ptr.vmem [resolvable:$true] %s1238
          %1244 = dma.vmem_to_hbm [thread:$0]  %s1239, 128, %s1237, %s1205, 64, 64, 4
        $region40: #{tpu_custom_call.1} parent=35 // pred_fallthru
          _
        // Predicated region
        $region41: #{tpu_custom_call.1} parent=35 // pred_check
          %p1245 = pneg %p172
        $region42: #{tpu_custom_call.1} parent=35 // pred_check_branch
          %1247 = sbr.rel (%p1245) target = $region44
        $region43: #{tpu_custom_call.1} parent=35 // pred_region
          _
        $region44: #{tpu_custom_call.1} parent=35 // pred_fallthru
          _
        // Predicated region
        $region45: #{tpu_custom_call.1} parent=35 // pred_check
          %p1248 = pneg %p200
        $region46: #{tpu_custom_call.1} parent=35 // pred_check_branch
          %1250 = sbr.rel (%p1248) target = $region48
        $region47: #{tpu_custom_call.1} parent=35 // pred_region
          _
        $region48: #{tpu_custom_call.1} parent=35 // pred_fallthru
          _
      $region36: #{tpu_custom_call.1} parent=5 // pred_fallthru
        _
      %p1251 = scmp.le.s32.totalorder 2, %s16
      // Predicated region
      $region49: #{tpu_custom_call.1} parent=5 // pred_check
        %p1252 = pneg %p1251
      $region50: #{tpu_custom_call.1} parent=5 // pred_check_branch
        %1254 = sbr.rel (%p1252) target = $region52
      $region51: #{tpu_custom_call.1} parent=5 // pred_region
        %s1255 = ssub.s32 %s16, 2
        // Predicated region
        $region53: #{tpu_custom_call.1} parent=51 // pred_check
          %p1256 = pneg %p150
        $region54: #{tpu_custom_call.1} parent=51 // pred_check_branch
          %1258 = sbr.rel (%p1256) target = $region56
        $region55: #{tpu_custom_call.1} parent=51 // pred_region
          %s1259 = sand.u32 %s135, 1
          %s1260 = scalar_lea.sflag [#allocation3], %s1259
          %s1261 = sand.u32 %s135, 1
          %s1262 = smul.addr %s1261, 8
          %s1263 = scalar_lea.vmem [#allocation2], %s1262
          %1264 = dma.done %s1260, 128
        $region56: #{tpu_custom_call.1} parent=51 // pred_fallthru
          _
        // Predicated region
        $region57: #{tpu_custom_call.1} parent=51 // pred_check
          %p1265 = pneg %p178
        $region58: #{tpu_custom_call.1} parent=51 // pred_check_branch
          %1267 = sbr.rel (%p1265) target = $region60
        $region59: #{tpu_custom_call.1} parent=51 // pred_region
          %p1268 = scmp.lt.s32.totalorder %s27, 1
          %s1269 = scalar_select %p1268, %s27, 1
          %p1270 = scmp.lt.s32.totalorder %s28, 3
          %s1271 = scalar_select %p1270, %s28, 3
          %s1272 = smul.addr %s1271, 2
          %s1273 = smul.addr %s1269, 8
          %s1274 = sadd.s32 %s1272, %s1273
          %s1275 = smul.addr %s1274, 8
          %s1276 = scalar_lea.vmem %s5, %s1275
        $region60: #{tpu_custom_call.1} parent=51 // pred_fallthru
          _
        // Predicated region
        $region61: #{tpu_custom_call.1} parent=51 // pred_check
          %p1277 = pneg %p206
        $region62: #{tpu_custom_call.1} parent=51 // pred_check_branch
          %1279 = sbr.rel (%p1277) target = $region64
        $region63: #{tpu_custom_call.1} parent=51 // pred_region
          %p1280 = scmp.lt.s32.totalorder %s27, 1
          %s1281 = scalar_select %p1280, %s27, 1
          %p1282 = scmp.lt.s32.totalorder %s28, 3
          %s1283 = scalar_select %p1282, %s28, 3
          %s1284 = smul.addr %s1283, 2
          %s1285 = smul.addr %s1281, 8
          %s1286 = sadd.s32 %s1284, %s1285
          %s1287 = smul.addr %s1286, 8
          %s1288 = scalar_lea.vmem %s6, %s1287
        $region64: #{tpu_custom_call.1} parent=51 // pred_fallthru
          _
      $region52: #{tpu_custom_call.1} parent=5 // pred_fallthru
        _
    $region6: #{tpu_custom_call.1} parent=1 // loop_footer
      %s20 = sadd.s32 1, %s16
    $region7: #{tpu_custom_call.1} parent=1 // loop_footer_branch
      %15 = sbr.rel target = $region3
    $region8: #{tpu_custom_call.1} parent=1 // loop_exit
      _
    %1289 = vsyncpa [#allocation3], 1
    %s1290 = scalar_lea.sflag [#allocation3], 1
    %1291 = vsyncpa %s1290, 1

</llo_original>
